<compile_context>
chip_gen: v6e
topology: v6e:2x2x1
jax: 0.10.0
libtpu: 0.0.40
codegen_flags: <defaults>
</compile_context>

<pallas_src>
import functools

import jax
import jax.numpy as jnp
from jax.experimental import pallas as pl
from jax.experimental.pallas import tpu as pltpu

LANES = 128  # TPU lane width; every channel-like dim is zero-padded to this.


# ----------------------------------------------------------------------------
# Fused kernel: stem matmul + inverted-residual block + pool + classifier
# ----------------------------------------------------------------------------
def _fused_mbv2_kernel(patches_ref, mask_ref,
                       w_stem_ref, b_stem_ref,
                       w_exp_ref, b_exp_ref,
                       w_dw_ref, b_dw_ref,
                       w_proj_ref, b_proj_ref,
                       w_fc_ref, b_fc_ref,
                       out_ref,
                       stem_s, hbuf_s,
                       *, Ho, Wo):
    Wp = Wo + 2                      # halo-padded row width
    HW = Ho * Wo                     # number of real (interior) spatial positions
    r0 = Wp + 1                      # first padded row whose full 3x3 halo is in-bounds
    M = Ho * Wp - 2                  # contiguous padded-row range covering all interior rows

    mask = mask_ref[...]             # (Hp*Wp, 1) f32: 1.0 on interior rows, 0.0 on halo

    # ---- stem: im2col'd 3x3/s2 conv as a single MXU matmul (BN folded) + ReLU6
    patches = patches_ref[0]                                   # (Hp*Wp, 128) bf16
    stem = jnp.dot(patches, w_stem_ref[...],
                   preferred_element_type=jnp.float32)
    stem = jnp.clip(stem + b_stem_ref[...], 0.0, 6.0)          # (Hp*Wp, 128) f32
    stem_s[...] = stem                                         # VMEM-resident for residual

    # ---- expand 1x1 + BN + ReLU6; zero halo rows so they act as the conv zero-padding
    h = jnp.dot(stem.astype(jnp.bfloat16), w_exp_ref[...],
                preferred_element_type=jnp.float32)
    h = jnp.clip(h + b_exp_ref[...], 0.0, 6.0) * mask          # (Hp*Wp, 128)
    hbuf_s[...] = h                                            # stays in VMEM (no HBM)

    # ---- depthwise 3x3 (stride 1, pad 1): 9 shifted contiguous-row slices, VPU FMAs
    acc = jnp.zeros((M, LANES), jnp.float32)
    for dy in range(3):
        for dx in range(3):
            off = (dy - 1) * Wp + (dx - 1)
            tap = hbuf_s[r0 + off:r0 + off + M, :]             # aligned-stride row window
            acc = acc + tap * w_dw_ref[3 * dy + dx:3 * dy + dx + 1, :]
    hdw = jnp.clip(acc + b_dw_ref[...], 0.0, 6.0)              # (M, 128)

    # ---- project 1x1 + BN, residual add, masked global average pool
    proj = jnp.dot(hdw.astype(jnp.bfloat16), w_proj_ref[...],
                   preferred_element_type=jnp.float32) + b_proj_ref[...]
    res = proj + stem_s[r0:r0 + M, :]
    pooled = jnp.sum(res * mask_ref[r0:r0 + M, :], axis=0, keepdims=True) * (1.0 / HW)

    # ---- classifier: lane-dense (128-wide, zero-padded classes) logits
    logits = jnp.dot(pooled.astype(jnp.bfloat16), w_fc_ref[...],
                     preferred_element_type=jnp.float32) + b_fc_ref[...]
    out_ref[...] = logits.reshape(out_ref.shape)


# ----------------------------------------------------------------------------
# Wrapper glue (plain JAX): layout transpose, stem im2col, halo/lane padding
# ----------------------------------------------------------------------------
def _im2col_3x3_s2(x_nhwc):
    """3x3 / stride-2 / pad-1 patches. (N,H,W,C) -> (N,Ho,Wo,9C), tap order (dy, dx, ci).
    Ho/Wo follow PyTorch's floor((H-1)/2)+1, so odd spatial sizes match too."""
    N, H, W, C = x_nhwc.shape
    Ho, Wo = (H + 1) // 2, (W + 1) // 2
    xp = jnp.pad(x_nhwc, ((0, 0), (1, 1), (1, 1), (0, 0)))
    taps = []
    for dy in range(3):
        for dx in range(3):
            taps.append(xp[:, dy:dy + 2 * Ho:2, dx:dx + 2 * Wo:2, :])
    return jnp.concatenate(taps, axis=-1), Ho, Wo


def _interior_mask(Ho, Wo):
    yp = jnp.arange(Ho + 2).reshape(-1, 1)
    xp = jnp.arange(Wo + 2).reshape(1, -1)
    inside = (yp >= 1) & (yp <= Ho) & (xp >= 1) & (xp <= Wo)
    return inside.astype(jnp.float32).reshape((Ho + 2) * (Wo + 2), 1)


def mobilenetv2_mixwrap_forward(x_nchw, params, *, num_classes=10):
    # MixWrap.forward(*args) simply delegates to the wrapped MobileNetV2 model.
    x = jnp.transpose(x_nchw, (0, 2, 3, 1)).astype(jnp.float32)      # NCHW -> NHWC (glue)
    N = x.shape[0]

    # stem im2col + spatial halo, flattened to a padded row layout (glue / input prep)
    patches, Ho, Wo = _im2col_3x3_s2(x)                              # (N, Ho, Wo, 9*Cin)
    Hp, Wp = Ho + 2, Wo + 2
    patches = jnp.pad(patches, ((0, 0), (1, 1), (1, 1), (0, 0)))     # halo rows/cols = 0
    K = patches.shape[-1]
    patches = patches.reshape(N, Hp * Wp, K)
    patches = jnp.pad(patches, ((0, 0), (0, 0), (0, LANES - K))).astype(jnp.bfloat16)

    mask = _interior_mask(Ho, Wo)                                    # (Hp*Wp, 1) f32

    kernel = functools.partial(_fused_mbv2_kernel, Ho=Ho, Wo=Wo)
    rep = lambda i: (0, 0)
    logits_pad = pl.pallas_call(
        kernel,
        grid=(N,),
        out_shape=jax.ShapeDtypeStruct((N, 1, LANES), jnp.float32),
        in_specs=[
            pl.BlockSpec((1, Hp * Wp, LANES), lambda i: (i, 0, 0)),  # im2col patches (bf16)
            pl.BlockSpec((Hp * Wp, 1), rep),                         # interior mask
            pl.BlockSpec((LANES, LANES), rep),   # w_stem (BN folded, bf16)
            pl.BlockSpec((1, LANES), rep),       # b_stem
            pl.BlockSpec((LANES, LANES), rep),   # w_exp
            pl.BlockSpec((1, LANES), rep),       # b_exp
            pl.BlockSpec((9, LANES), rep),       # w_dw (3x3 depthwise, BN folded, f32)
            pl.BlockSpec((1, LANES), rep),       # b_dw
            pl.BlockSpec((LANES, LANES), rep),   # w_proj
            pl.BlockSpec((1, LANES), rep),       # b_proj
            pl.BlockSpec((LANES, LANES), rep),   # w_fc
            pl.BlockSpec((1, LANES), rep),       # b_fc
        ],
        out_specs=pl.BlockSpec((1, 1, LANES), lambda i: (i, 0, 0)),
        scratch_shapes=[
            pltpu.VMEM((Hp * Wp, LANES), jnp.float32),   # stem activation (residual)
            pltpu.VMEM((Hp * Wp, LANES), jnp.float32),   # expanded activation (dw input)
        ],
        compiler_params=pltpu.CompilerParams(
            dimension_semantics=("parallel",),           # batch blocks -> both TCs on v7x
            vmem_limit_bytes=32 * 1024 * 1024,
        ),
    )(patches, mask,
      params["w_stem"], params["b_stem"], params["w_exp"], params["b_exp"],
      params["w_dw"], params["b_dw"], params["w_proj"], params["b_proj"],
      params["w_fc"], params["b_fc"])

    return logits_pad.reshape(N, LANES)[:, :num_classes]


# ----------------------------------------------------------------------------
# Parameters: deterministic stand-in MobileNetV2, BN folded, lane-padded, bf16 weights
# ----------------------------------------------------------------------------
def _fold_bn(gamma, beta, mean, var, eps=1e-5):
    scale = gamma / jnp.sqrt(var + eps)
    return scale, beta - mean * scale


def make_params(key, cin=4, c_stem=8, c_exp=16, num_classes=10):
    assert 9 * cin <= LANES and c_stem <= LANES and c_exp <= LANES and num_classes <= LANES
    keys = iter(jax.random.split(key, 24))

    def nrm(shape, s=0.1):
        return (s * jax.random.normal(next(keys), shape)).astype(jnp.float32)

    def bn(c):
        gamma = 1.0 + nrm((c,))
        beta = nrm((c,))
        mean = nrm((c,))
        var = jnp.abs(nrm((c,))) + 0.5
        return _fold_bn(gamma, beta, mean, var)

    def embed(a, shape):
        out = jnp.zeros(shape, jnp.float32)
        return out.at[tuple(slice(0, d) for d in a.shape)].set(a)

    s_stem, b_stem = bn(c_stem)
    s_exp, b_exp = bn(c_exp)
    s_dw, b_dw = bn(c_exp)
    s_proj, b_proj = bn(c_stem)

    w_stem = nrm((3, 3, cin, c_stem)).reshape(9 * cin, c_stem) * s_stem[None, :]
    w_exp = nrm((c_stem, c_exp)) * s_exp[None, :]
    w_dw = nrm((3, 3, c_exp)).reshape(9, c_exp) * s_dw[None, :]
    w_proj = nrm((c_exp, c_stem)) * s_proj[None, :]
    w_fc = nrm((c_stem, num_classes))
    b_fc = nrm((num_classes,))

    return {
        "w_stem": embed(w_stem, (LANES, LANES)).astype(jnp.bfloat16),
        "b_stem": embed(b_stem[None, :], (1, LANES)),
        "w_exp": embed(w_exp, (LANES, LANES)).astype(jnp.bfloat16),
        "b_exp": embed(b_exp[None, :], (1, LANES)),
        "w_dw": embed(w_dw, (9, LANES)),                       # f32: used on the VPU
        "b_dw": embed(b_dw[None, :], (1, LANES)),
        "w_proj": embed(w_proj, (LANES, LANES)).astype(jnp.bfloat16),
        "b_proj": embed(b_proj[None, :], (1, LANES)),
        "w_fc": embed(w_fc, (LANES, LANES)).astype(jnp.bfloat16),
        "b_fc": embed(b_fc[None, :], (1, LANES)),
    }


# ----------------------------------------------------------------------------
# Pure-JAX mirror of the fused kernel (same folded/padded params, same bf16 math)
# ----------------------------------------------------------------------------
def forward_reference(x_nchw, params, *, num_classes=10):
    x = jnp.transpose(x_nchw, (0, 2, 3, 1)).astype(jnp.float32)
    patches, Ho, Wo = _im2col_3x3_s2(x)
    N = x.shape[0]
    HW = Ho * Wo
    K = patches.shape[-1]
    p = jnp.pad(patches.reshape(N * HW, K), ((0, 0), (0, LANES - K))).astype(jnp.bfloat16)

    def mm(a, w):
        return jnp.dot(a.astype(jnp.bfloat16), w, preferred_element_type=jnp.float32)

    stem = jnp.clip(mm(p, params["w_stem"]) + params["b_stem"], 0.0, 6.0)
    h = jnp.clip(mm(stem, params["w_exp"]) + params["b_exp"], 0.0, 6.0)
    hp = jnp.pad(h.reshape(N, Ho, Wo, LANES), ((0, 0), (1, 1), (1, 1), (0, 0)))
    acc = jnp.zeros((N, Ho, Wo, LANES), jnp.float32)
    for dy in range(3):
        for dx in range(3):
            acc = acc + hp[:, dy:dy + Ho, dx:dx + Wo, :] * params["w_dw"][3 * dy + dx]
    hdw = jnp.clip(acc + params["b_dw"].reshape(1, 1, 1, LANES), 0.0, 6.0)
    proj = mm(hdw.reshape(N * HW, LANES), params["w_proj"]) + params["b_proj"]
    pooled = jnp.mean((proj + stem).reshape(N, HW, LANES), axis=1)
    logits = mm(pooled, params["w_fc"]) + params["b_fc"]
    return logits[:, :num_classes]


if __name__ == "__main__":
    key = jax.random.PRNGKey(0)
    k_x, k_p = jax.random.split(key)
    x = jax.random.normal(k_x, (2, 4, 16, 16), dtype=jnp.float32)    # NCHW like PyTorch
    params = make_params(k_p, cin=4, c_stem=8, c_exp=16, num_classes=10)

    fwd = jax.jit(mobilenetv2_mixwrap_forward)
    logits = fwd(x, params)
    jax.block_until_ready(logits)

    assert logits.shape == (2, 10), logits.shape
    assert bool(jnp.all(jnp.isfinite(logits)))

    ref = forward_reference(x, params)
    assert bool(jnp.allclose(logits, ref, rtol=1e-2, atol=1e-2)), (
        float(jnp.max(jnp.abs(logits - ref))))
    print("KERNEL_OK")
</pallas_src>

<mosaic_0001>
module attributes {stable_mosaic.version = 11 : i64} {
  func.func @_fused_mbv2_kernel(%arg0: i32, %arg1: memref<1x100x128xbf16, #tpu.memory_space<vmem>>, %arg2: memref<100x1xf32, #tpu.memory_space<vmem>>, %arg3: memref<128x128xbf16, #tpu.memory_space<vmem>>, %arg4: memref<1x128xf32, #tpu.memory_space<vmem>>, %arg5: memref<128x128xbf16, #tpu.memory_space<vmem>>, %arg6: memref<1x128xf32, #tpu.memory_space<vmem>>, %arg7: memref<9x128xf32, #tpu.memory_space<vmem>>, %arg8: memref<1x128xf32, #tpu.memory_space<vmem>>, %arg9: memref<128x128xbf16, #tpu.memory_space<vmem>>, %arg10: memref<1x128xf32, #tpu.memory_space<vmem>>, %arg11: memref<128x128xbf16, #tpu.memory_space<vmem>>, %arg12: memref<1x128xf32, #tpu.memory_space<vmem>>, %arg13: memref<1x1x128xf32, #tpu.memory_space<vmem>>, %arg14: memref<100x128xf32, #tpu.memory_space<vmem>>, %arg15: memref<100x128xf32, #tpu.memory_space<vmem>>) attributes {dimension_semantics = [#tpu.dimension_semantics<parallel>], iteration_bounds = array<i64: 2>, scalar_prefetch = 0 : i64, scratch_operands = 2 : i64, tpu.core_type = #tpu.core_type<tc>, window_params = [{transform_indices = @transform_0, window_bounds = array<i64: 1, 100, 128>}, {pipeline_mode = #tpu.pipeline_mode<synchronous>, transform_indices = @transform_1, window_bounds = array<i64: 100, 1>}, {pipeline_mode = #tpu.pipeline_mode<synchronous>, transform_indices = @transform_2, window_bounds = array<i64: 128, 128>}, {pipeline_mode = #tpu.pipeline_mode<synchronous>, transform_indices = @transform_3, window_bounds = array<i64: 1, 128>}, {pipeline_mode = #tpu.pipeline_mode<synchronous>, transform_indices = @transform_4, window_bounds = array<i64: 128, 128>}, {pipeline_mode = #tpu.pipeline_mode<synchronous>, transform_indices = @transform_5, window_bounds = array<i64: 1, 128>}, {pipeline_mode = #tpu.pipeline_mode<synchronous>, transform_indices = @transform_6, window_bounds = array<i64: 9, 128>}, {pipeline_mode = #tpu.pipeline_mode<synchronous>, transform_indices = @transform_7, window_bounds = array<i64: 1, 128>}, {pipeline_mode = #tpu.pipeline_mode<synchronous>, transform_indices = @transform_8, window_bounds = array<i64: 128, 128>}, {pipeline_mode = #tpu.pipeline_mode<synchronous>, transform_indices = @transform_9, window_bounds = array<i64: 1, 128>}, {pipeline_mode = #tpu.pipeline_mode<synchronous>, transform_indices = @transform_10, window_bounds = array<i64: 128, 128>}, {pipeline_mode = #tpu.pipeline_mode<synchronous>, transform_indices = @transform_11, window_bounds = array<i64: 1, 128>}, {transform_indices = @transform_12, window_bounds = array<i64: 1, 1, 128>}]} {
    %c0 = arith.constant 0 : index
    %c0_0 = arith.constant 0 : index
    %0 = vector.load %arg2[%c0, %c0_0] : memref<100x1xf32, #tpu.memory_space<vmem>>, vector<100x1xf32>
    %c0_1 = arith.constant 0 : index
    %c0_2 = arith.constant 0 : index
    %c0_3 = arith.constant 0 : index
    %1 = vector.load %arg1[%c0_1, %c0_2, %c0_3] : memref<1x100x128xbf16, #tpu.memory_space<vmem>>, vector<1x100x128xbf16>
    %2 = vector.shape_cast %1 : vector<1x100x128xbf16> to vector<100x128xbf16>
    %c0_4 = arith.constant 0 : index
    %c0_5 = arith.constant 0 : index
    %3 = vector.load %arg3[%c0_4, %c0_5] : memref<128x128xbf16, #tpu.memory_space<vmem>>, vector<128x128xbf16>
    %cst = arith.constant dense<0.000000e+00> : vector<100x128xf32>
    %4 = tpu.matmul %2, %3, %cst {dimension_numbers = #tpu.dot_dimension_numbers<[1], [0], [0], [1], [0, 0, 1, 1], [], []>} : vector<100x128xbf16>, vector<128x128xbf16>, vector<100x128xf32> -> vector<100x128xf32>
    %c0_6 = arith.constant 0 : index
    %c0_7 = arith.constant 0 : index
    %5 = vector.load %arg4[%c0_6, %c0_7] : memref<1x128xf32, #tpu.memory_space<vmem>>, vector<1x128xf32>
    %6 = vector.broadcast %5 : vector<1x128xf32> to vector<100x128xf32>
    %7 = arith.addf %4, %6 : vector<100x128xf32>
    %cst_8 = arith.constant 0.000000e+00 : f32
    %cst_9 = arith.constant 6.000000e+00 : f32
    %8 = vector.broadcast %cst_8 : f32 to vector<100x128xf32>
    %9 = arith.maximumf %8, %7 : vector<100x128xf32>
    %10 = vector.broadcast %cst_9 : f32 to vector<100x128xf32>
    %11 = arith.minimumf %10, %9 : vector<100x128xf32>
    %c0_10 = arith.constant 0 : index
    %c0_11 = arith.constant 0 : index
    %12 = vector.load %arg14[%c0_10, %c0_11] : memref<100x128xf32, #tpu.memory_space<vmem>>, vector<100x128xf32>
    tpu.vector_store %arg14[%c0_10, %c0_11], %11 {strides = array<i32>} : memref<100x128xf32, #tpu.memory_space<vmem>>, vector<100x128xf32>,
    %13 = arith.truncf %11 : vector<100x128xf32> to vector<100x128xbf16>
    %c0_12 = arith.constant 0 : index
    %c0_13 = arith.constant 0 : index
    %14 = vector.load %arg5[%c0_12, %c0_13] : memref<128x128xbf16, #tpu.memory_space<vmem>>, vector<128x128xbf16>
    %cst_14 = arith.constant dense<0.000000e+00> : vector<100x128xf32>
    %15 = tpu.matmul %13, %14, %cst_14 {dimension_numbers = #tpu.dot_dimension_numbers<[1], [0], [0], [1], [0, 0, 1, 1], [], []>} : vector<100x128xbf16>, vector<128x128xbf16>, vector<100x128xf32> -> vector<100x128xf32>
    %c0_15 = arith.constant 0 : index
    %c0_16 = arith.constant 0 : index
    %16 = vector.load %arg6[%c0_15, %c0_16] : memref<1x128xf32, #tpu.memory_space<vmem>>, vector<1x128xf32>
    %17 = vector.broadcast %16 : vector<1x128xf32> to vector<100x128xf32>
    %18 = arith.addf %15, %17 : vector<100x128xf32>
    %cst_17 = arith.constant 0.000000e+00 : f32
    %cst_18 = arith.constant 6.000000e+00 : f32
    %19 = vector.broadcast %cst_17 : f32 to vector<100x128xf32>
    %20 = arith.maximumf %19, %18 : vector<100x128xf32>
    %21 = vector.broadcast %cst_18 : f32 to vector<100x128xf32>
    %22 = arith.minimumf %21, %20 : vector<100x128xf32>
    %23 = vector.broadcast %0 : vector<100x1xf32> to vector<100x128xf32>
    %24 = arith.mulf %22, %23 : vector<100x128xf32>
    %c0_19 = arith.constant 0 : index
    %c0_20 = arith.constant 0 : index
    %25 = vector.load %arg15[%c0_19, %c0_20] : memref<100x128xf32, #tpu.memory_space<vmem>>, vector<100x128xf32>
    tpu.vector_store %arg15[%c0_19, %c0_20], %24 {strides = array<i32>} : memref<100x128xf32, #tpu.memory_space<vmem>>, vector<100x128xf32>,
    %cst_21 = arith.constant 0.000000e+00 : f32
    %26 = vector.broadcast %cst_21 : f32 to vector<78x128xf32>
    %c0_22 = arith.constant 0 : index
    %c0_23 = arith.constant 0 : index
    %27 = vector.load %arg15[%c0_22, %c0_23] : memref<100x128xf32, #tpu.memory_space<vmem>>, vector<78x128xf32>
    %c0_24 = arith.constant 0 : index
    %c0_25 = arith.constant 0 : index
    %28 = vector.load %arg7[%c0_24, %c0_25] : memref<9x128xf32, #tpu.memory_space<vmem>>, vector<1x128xf32>
    %29 = vector.broadcast %28 : vector<1x128xf32> to vector<78x128xf32>
    %30 = arith.mulf %27, %29 : vector<78x128xf32>
    %31 = arith.addf %26, %30 : vector<78x128xf32>
    %c1 = arith.constant 1 : index
    %c0_26 = arith.constant 0 : index
    %32 = vector.load %arg15[%c1, %c0_26] : memref<100x128xf32, #tpu.memory_space<vmem>>, vector<78x128xf32>
    %c1_27 = arith.constant 1 : index
    %c0_28 = arith.constant 0 : index
    %33 = vector.load %arg7[%c1_27, %c0_28] : memref<9x128xf32, #tpu.memory_space<vmem>>, vector<1x128xf32>
    %34 = vector.broadcast %33 : vector<1x128xf32> to vector<78x128xf32>
    %35 = arith.mulf %32, %34 : vector<78x128xf32>
    %36 = arith.addf %31, %35 : vector<78x128xf32>
    %c2 = arith.constant 2 : index
    %c0_29 = arith.constant 0 : index
    %37 = vector.load %arg15[%c2, %c0_29] : memref<100x128xf32, #tpu.memory_space<vmem>>, vector<78x128xf32>
    %c2_30 = arith.constant 2 : index
    %c0_31 = arith.constant 0 : index
    %38 = vector.load %arg7[%c2_30, %c0_31] : memref<9x128xf32, #tpu.memory_space<vmem>>, vector<1x128xf32>
    %39 = vector.broadcast %38 : vector<1x128xf32> to vector<78x128xf32>
    %40 = arith.mulf %37, %39 : vector<78x128xf32>
    %41 = arith.addf %36, %40 : vector<78x128xf32>
    %c10 = arith.constant 10 : index
    %c0_32 = arith.constant 0 : index
    %42 = vector.load %arg15[%c10, %c0_32] : memref<100x128xf32, #tpu.memory_space<vmem>>, vector<78x128xf32>
    %c3 = arith.constant 3 : index
    %c0_33 = arith.constant 0 : index
    %43 = vector.load %arg7[%c3, %c0_33] : memref<9x128xf32, #tpu.memory_space<vmem>>, vector<1x128xf32>
    %44 = vector.broadcast %43 : vector<1x128xf32> to vector<78x128xf32>
    %45 = arith.mulf %42, %44 : vector<78x128xf32>
    %46 = arith.addf %41, %45 : vector<78x128xf32>
    %c11 = arith.constant 11 : index
    %c0_34 = arith.constant 0 : index
    %47 = vector.load %arg15[%c11, %c0_34] : memref<100x128xf32, #tpu.memory_space<vmem>>, vector<78x128xf32>
    %c4 = arith.constant 4 : index
    %c0_35 = arith.constant 0 : index
    %48 = vector.load %arg7[%c4, %c0_35] : memref<9x128xf32, #tpu.memory_space<vmem>>, vector<1x128xf32>
    %49 = vector.broadcast %48 : vector<1x128xf32> to vector<78x128xf32>
    %50 = arith.mulf %47, %49 : vector<78x128xf32>
    %51 = arith.addf %46, %50 : vector<78x128xf32>
    %c12 = arith.constant 12 : index
    %c0_36 = arith.constant 0 : index
    %52 = vector.load %arg15[%c12, %c0_36] : memref<100x128xf32, #tpu.memory_space<vmem>>, vector<78x128xf32>
    %c5 = arith.constant 5 : index
    %c0_37 = arith.constant 0 : index
    %53 = vector.load %arg7[%c5, %c0_37] : memref<9x128xf32, #tpu.memory_space<vmem>>, vector<1x128xf32>
    %54 = vector.broadcast %53 : vector<1x128xf32> to vector<78x128xf32>
    %55 = arith.mulf %52, %54 : vector<78x128xf32>
    %56 = arith.addf %51, %55 : vector<78x128xf32>
    %c20 = arith.constant 20 : index
    %c0_38 = arith.constant 0 : index
    %57 = vector.load %arg15[%c20, %c0_38] : memref<100x128xf32, #tpu.memory_space<vmem>>, vector<78x128xf32>
    %c6 = arith.constant 6 : index
    %c0_39 = arith.constant 0 : index
    %58 = vector.load %arg7[%c6, %c0_39] : memref<9x128xf32, #tpu.memory_space<vmem>>, vector<1x128xf32>
    %59 = vector.broadcast %58 : vector<1x128xf32> to vector<78x128xf32>
    %60 = arith.mulf %57, %59 : vector<78x128xf32>
    %61 = arith.addf %56, %60 : vector<78x128xf32>
    %c21 = arith.constant 21 : index
    %c0_40 = arith.constant 0 : index
    %62 = vector.load %arg15[%c21, %c0_40] : memref<100x128xf32, #tpu.memory_space<vmem>>, vector<78x128xf32>
    %c7 = arith.constant 7 : index
    %c0_41 = arith.constant 0 : index
    %63 = vector.load %arg7[%c7, %c0_41] : memref<9x128xf32, #tpu.memory_space<vmem>>, vector<1x128xf32>
    %64 = vector.broadcast %63 : vector<1x128xf32> to vector<78x128xf32>
    %65 = arith.mulf %62, %64 : vector<78x128xf32>
    %66 = arith.addf %61, %65 : vector<78x128xf32>
    %c22 = arith.constant 22 : index
    %c0_42 = arith.constant 0 : index
    %67 = vector.load %arg15[%c22, %c0_42] : memref<100x128xf32, #tpu.memory_space<vmem>>, vector<78x128xf32>
    %c8 = arith.constant 8 : index
    %c0_43 = arith.constant 0 : index
    %68 = vector.load %arg7[%c8, %c0_43] : memref<9x128xf32, #tpu.memory_space<vmem>>, vector<1x128xf32>
    %69 = vector.broadcast %68 : vector<1x128xf32> to vector<78x128xf32>
    %70 = arith.mulf %67, %69 : vector<78x128xf32>
    %71 = arith.addf %66, %70 : vector<78x128xf32>
    %c0_44 = arith.constant 0 : index
    %c0_45 = arith.constant 0 : index
    %72 = vector.load %arg8[%c0_44, %c0_45] : memref<1x128xf32, #tpu.memory_space<vmem>>, vector<1x128xf32>
    %73 = vector.broadcast %72 : vector<1x128xf32> to vector<78x128xf32>
    %74 = arith.addf %71, %73 : vector<78x128xf32>
    %cst_46 = arith.constant 0.000000e+00 : f32
    %cst_47 = arith.constant 6.000000e+00 : f32
    %75 = vector.broadcast %cst_46 : f32 to vector<78x128xf32>
    %76 = arith.maximumf %75, %74 : vector<78x128xf32>
    %77 = vector.broadcast %cst_47 : f32 to vector<78x128xf32>
    %78 = arith.minimumf %77, %76 : vector<78x128xf32>
    %79 = arith.truncf %78 : vector<78x128xf32> to vector<78x128xbf16>
    %c0_48 = arith.constant 0 : index
    %c0_49 = arith.constant 0 : index
    %80 = vector.load %arg9[%c0_48, %c0_49] : memref<128x128xbf16, #tpu.memory_space<vmem>>, vector<128x128xbf16>
    %cst_50 = arith.constant dense<0.000000e+00> : vector<78x128xf32>
    %81 = tpu.matmul %79, %80, %cst_50 {dimension_numbers = #tpu.dot_dimension_numbers<[1], [0], [0], [1], [0, 0, 1, 1], [], []>} : vector<78x128xbf16>, vector<128x128xbf16>, vector<78x128xf32> -> vector<78x128xf32>
    %c0_51 = arith.constant 0 : index
    %c0_52 = arith.constant 0 : index
    %82 = vector.load %arg10[%c0_51, %c0_52] : memref<1x128xf32, #tpu.memory_space<vmem>>, vector<1x128xf32>
    %83 = vector.broadcast %82 : vector<1x128xf32> to vector<78x128xf32>
    %84 = arith.addf %81, %83 : vector<78x128xf32>
    %c11_53 = arith.constant 11 : index
    %c0_54 = arith.constant 0 : index
    %85 = vector.load %arg14[%c11_53, %c0_54] : memref<100x128xf32, #tpu.memory_space<vmem>>, vector<78x128xf32>
    %86 = arith.addf %84, %85 : vector<78x128xf32>
    %c11_55 = arith.constant 11 : index
    %c0_56 = arith.constant 0 : index
    %87 = vector.load %arg2[%c11_55, %c0_56] : memref<100x1xf32, #tpu.memory_space<vmem>>, vector<78x1xf32>
    %88 = vector.broadcast %87 : vector<78x1xf32> to vector<78x128xf32>
    %89 = arith.mulf %86, %88 : vector<78x128xf32>
    %cst_57 = arith.constant dense<0.000000e+00> : vector<128xf32>
    %90 = vector.multi_reduction <add>, %89, %cst_57 [0] : vector<78x128xf32> to vector<128xf32>
    %91 = vector.shape_cast %90 : vector<128xf32> to vector<1x128xf32>
    %cst_58 = arith.constant 1.562500e-02 : f32
    %92 = vector.broadcast %cst_58 : f32 to vector<1x128xf32>
    %93 = arith.mulf %91, %92 : vector<1x128xf32>
    %94 = arith.truncf %93 : vector<1x128xf32> to vector<1x128xbf16>
    %c0_59 = arith.constant 0 : index
    %c0_60 = arith.constant 0 : index
    %95 = vector.load %arg11[%c0_59, %c0_60] : memref<128x128xbf16, #tpu.memory_space<vmem>>, vector<128x128xbf16>
    %cst_61 = arith.constant dense<0.000000e+00> : vector<1x128xf32>
    %96 = tpu.matmul %94, %95, %cst_61 {dimension_numbers = #tpu.dot_dimension_numbers<[1], [0], [0], [1], [0, 0, 1, 1], [], []>} : vector<1x128xbf16>, vector<128x128xbf16>, vector<1x128xf32> -> vector<1x128xf32>
    %c0_62 = arith.constant 0 : index
    %c0_63 = arith.constant 0 : index
    %97 = vector.load %arg12[%c0_62, %c0_63] : memref<1x128xf32, #tpu.memory_space<vmem>>, vector<1x128xf32>
    %98 = arith.addf %96, %97 : vector<1x128xf32>
    %99 = vector.shape_cast %98 : vector<1x128xf32> to vector<1x1x128xf32>
    %c0_64 = arith.constant 0 : index
    %c0_65 = arith.constant 0 : index
    %c0_66 = arith.constant 0 : index
    %100 = vector.load %arg13[%c0_64, %c0_65, %c0_66] : memref<1x1x128xf32, #tpu.memory_space<vmem>>, vector<1x1x128xf32>
    tpu.vector_store %arg13[%c0_64, %c0_65, %c0_66], %99 {strides = array<i32>} : memref<1x1x128xf32, #tpu.memory_space<vmem>>, vector<1x1x128xf32>,
    return
  }
  func.func @transform_0(%arg0: i32) -> (i32, i32, i32) {
    %c0_i32 = arith.constant 0 : i32
    %c0_i32_0 = arith.constant 0 : i32
    %c0_i32_1 = arith.constant 0 : i32
    return %arg0, %c0_i32, %c0_i32_0 : i32, i32, i32
  }
  func.func @transform_1(%arg0: i32) -> (i32, i32) {
    %c0_i32 = arith.constant 0 : i32
    %c0_i32_0 = arith.constant 0 : i32
    %c0_i32_1 = arith.constant 0 : i32
    return %c0_i32, %c0_i32_0 : i32, i32
  }
  func.func @transform_2(%arg0: i32) -> (i32, i32) {
    %c0_i32 = arith.constant 0 : i32
    %c0_i32_0 = arith.constant 0 : i32
    %c0_i32_1 = arith.constant 0 : i32
    return %c0_i32, %c0_i32_0 : i32, i32
  }
  func.func @transform_3(%arg0: i32) -> (i32, i32) {
    %c0_i32 = arith.constant 0 : i32
    %c0_i32_0 = arith.constant 0 : i32
    %c0_i32_1 = arith.constant 0 : i32
    return %c0_i32, %c0_i32_0 : i32, i32
  }
  func.func @transform_4(%arg0: i32) -> (i32, i32) {
    %c0_i32 = arith.constant 0 : i32
    %c0_i32_0 = arith.constant 0 : i32
    %c0_i32_1 = arith.constant 0 : i32
    return %c0_i32, %c0_i32_0 : i32, i32
  }
  func.func @transform_5(%arg0: i32) -> (i32, i32) {
    %c0_i32 = arith.constant 0 : i32
    %c0_i32_0 = arith.constant 0 : i32
    %c0_i32_1 = arith.constant 0 : i32
    return %c0_i32, %c0_i32_0 : i32, i32
  }
  func.func @transform_6(%arg0: i32) -> (i32, i32) {
    %c0_i32 = arith.constant 0 : i32
    %c0_i32_0 = arith.constant 0 : i32
    %c0_i32_1 = arith.constant 0 : i32
    return %c0_i32, %c0_i32_0 : i32, i32
  }
  func.func @transform_7(%arg0: i32) -> (i32, i32) {
    %c0_i32 = arith.constant 0 : i32
    %c0_i32_0 = arith.constant 0 : i32
    %c0_i32_1 = arith.constant 0 : i32
    return %c0_i32, %c0_i32_0 : i32, i32
  }
  func.func @transform_8(%arg0: i32) -> (i32, i32) {
    %c0_i32 = arith.constant 0 : i32
    %c0_i32_0 = arith.constant 0 : i32
    %c0_i32_1 = arith.constant 0 : i32
    return %c0_i32, %c0_i32_0 : i32, i32
  }
  func.func @transform_9(%arg0: i32) -> (i32, i32) {
    %c0_i32 = arith.constant 0 : i32
    %c0_i32_0 = arith.constant 0 : i32
    %c0_i32_1 = arith.constant 0 : i32
    return %c0_i32, %c0_i32_0 : i32, i32
  }
  func.func @transform_10(%arg0: i32) -> (i32, i32) {
    %c0_i32 = arith.constant 0 : i32
    %c0_i32_0 = arith.constant 0 : i32
    %c0_i32_1 = arith.constant 0 : i32
    return %c0_i32, %c0_i32_0 : i32, i32
  }
  func.func @transform_11(%arg0: i32) -> (i32, i32) {
    %c0_i32 = arith.constant 0 : i32
    %c0_i32_0 = arith.constant 0 : i32
    %c0_i32_1 = arith.constant 0 : i32
    return %c0_i32, %c0_i32_0 : i32, i32
  }
  func.func @transform_12(%arg0: i32) -> (i32, i32, i32) {
    %c0_i32 = arith.constant 0 : i32
    %c0_i32_0 = arith.constant 0 : i32
    %c0_i32_1 = arith.constant 0 : i32
    return %arg0, %c0_i32, %c0_i32_0 : i32, i32, i32
  }
}

</mosaic_0001>

<llo_original>
// kernel: mobilenetv2_mixwrap_forward.1
$region0: #{mobilenetv2_mixwrap_forward.1}
  #allocation0 [shape = 'u32[]', space=smem, size = 0x4, offset = 0x4, fixed_abs, tag = 'smem constant byte address 0x4 - core index']
  #allocation1 [shape = 'u32[144,128]{1,0:T(1,128)}', space=vmem, size = 0x12000, scoped, tag = 'internal scratch']
  #allocation2 [shape = 'f32[100,128]{1,0:T(8,128)}', space=vmem, size = 0xd000, scoped, tag = 'scratch operand']
  #allocation3 [shape = 'f32[100,128]{1,0:T(8,128)}', space=vmem, size = 0xd000, scoped, tag = 'scratch operand']
  %s0 = inlined_call_operand.vmem [shape: bf16[2,100,128], index: 0, kind: input, shape index: {}]
  %s1 = inlined_call_operand.vmem [shape: f32[100,1], index: 1, kind: input, shape index: {}]
  %s2 = inlined_call_operand.vmem [shape: bf16[128,128], index: 2, kind: input, shape index: {}]
  %s3 = inlined_call_operand.vmem [shape: f32[1,128], index: 3, kind: input, shape index: {}]
  %s4 = inlined_call_operand.vmem [shape: bf16[128,128], index: 4, kind: input, shape index: {}]
  %s5 = inlined_call_operand.vmem [shape: f32[1,128], index: 5, kind: input, shape index: {}]
  %s6 = inlined_call_operand.vmem [shape: f32[9,128], index: 6, kind: input, shape index: {}]
  %s7 = inlined_call_operand.vmem [shape: f32[1,128], index: 7, kind: input, shape index: {}]
  %s8 = inlined_call_operand.vmem [shape: bf16[128,128], index: 8, kind: input, shape index: {}]
  %s9 = inlined_call_operand.vmem [shape: f32[1,128], index: 9, kind: input, shape index: {}]
  %s10 = inlined_call_operand.vmem [shape: bf16[128,128], index: 10, kind: input, shape index: {}]
  %s11 = inlined_call_operand.vmem [shape: f32[1,128], index: 11, kind: input, shape index: {}]
  %s12 = inlined_call_operand.hbm [shape: f32[2,1,128], index: 12, kind: output, shape index: {}]
  %s13 = sld [smem:[#allocation0]]
  $region81: #{mobilenetv2_mixwrap_forward.1} parent=0
    _
  %s15 = ssub.s32 1, %s13
  %s16 = scalar_select 0, %s15, %s13
  $region1: #{mobilenetv2_mixwrap_forward.1} parent=0
    #allocation4 [shape = 'u8[1024]{0}', space=vmem, size = 0x400, scoped, tag = 'output window, operand 0']
    #allocation5 [shape = 's32[2]{0}', space=sflag, size = 0x8, scoped, tag = 'scoped memory for mobilenetv2_mixwrap_forward.1']
    %17 = vsyncpa [#allocation5], 0
    %s18 = scalar_lea.sflag [#allocation5], 1
    %19 = vsyncpa %s18, 0
    loop: start=0, step=1, limit=4
    $region2: #{mobilenetv2_mixwrap_forward.1} parent=1 // loop_pre_header
      _
    $region3: #{mobilenetv2_mixwrap_forward.1} parent=1 // loop_header
      %s21 = sphi 0, %s25
      %p22 = scmp.ge.s32.totalorder %s21, 4
      %s31 = sphi 0, %s33
      %s34 = sphi 0, %s31
      %s35 = sphi 0, %s34
      %s51 = sphi 0, %s35
      %s55 = sphi 0, %s55
      %s57 = sphi 0, %s55
      %s58 = sphi 0, %s57
      %s72 = sphi 0, %s58
      %s76 = sphi 0, %s76
      %s78 = sphi 0, %s76
      %s79 = sphi 0, %s78
      %s93 = sphi 0, %s79
      %s97 = sphi 0, %s97
      %s99 = sphi 0, %s97
      %s100 = sphi 0, %s99
      %s114 = sphi 0, %s100
      %s118 = sphi 0, %s118
      %s120 = sphi 0, %s118
      %s121 = sphi 0, %s120
      %s135 = sphi 0, %s121
      %s139 = sphi 0, %s139
      %s141 = sphi 0, %s139
      %s142 = sphi 0, %s141
      %s156 = sphi 0, %s142
      %s160 = sphi 0, %s160
      %s162 = sphi 0, %s160
      %s163 = sphi 0, %s162
      %s177 = sphi 0, %s163
      %s181 = sphi 0, %s181
      %s183 = sphi 0, %s181
      %s184 = sphi 0, %s183
      %s198 = sphi 0, %s184
      %s202 = sphi 0, %s202
      %s204 = sphi 0, %s202
      %s205 = sphi 0, %s204
      %s219 = sphi 0, %s205
      %s223 = sphi 0, %s223
      %s225 = sphi 0, %s223
      %s226 = sphi 0, %s225
      %s240 = sphi 0, %s226
      %s244 = sphi 0, %s244
      %s246 = sphi 0, %s244
      %s247 = sphi 0, %s246
      %s261 = sphi 0, %s247
      %s265 = sphi 0, %s265
      %s267 = sphi 0, %s265
      %s268 = sphi 0, %s267
      %s282 = sphi 0, %s268
      %s288 = sphi 0, %s290
      %s291 = sphi 0, %s288
      %s292 = sphi 0, %s291
      %s308 = sphi 0, %s292
    $region4: #{mobilenetv2_mixwrap_forward.1} parent=1 // loop_header_branch
      %24 = sbr.rel (%p22) target = $region8
    $region5: #{mobilenetv2_mixwrap_forward.1} parent=1 // loop_body
      %s26 = ssub.s32 %s21, 1
      %s27 = ssub.s32 %s21, 2
      %s28 = sadd.s32 %s21, 1
      %s29 = ssub.s32 %s21, %s28
      %p30 = scmp.eq.s32.totalorder %s29, 0
      %s32 = sadd.s32 %s31, 1
      %s33 = scalar_select %p30, %s31, %s32
      %p36 = pneg %p30
      %p37 = scmp.eq.s32.totalorder %s21, 1
      %p38 = por %p36, %p37
      %p39 = scmp.ne.s32.totalorder %s31, %s34
      %p40 = scmp.eq.s32.totalorder %s21, 0
      %p41 = por %p39, %p40
      %p42 = scmp.ne.s32.totalorder %s31, %s34
      %p43 = scmp.eq.s32.totalorder %s26, 1
      %p44 = por %p42, %p43
      %p45 = scmp.ne.s32.totalorder %s34, %s35
      %p46 = scmp.eq.s32.totalorder %s26, 0
      %p47 = por %p45, %p46
      %p48 = scmp.ne.s32.totalorder %s34, %s35
      %p49 = scmp.eq.s32.totalorder %s27, 1
      %p50 = por %p48, %p49
      %p52 = scmp.ne.s32.totalorder %s35, %s51
      %p53 = scmp.eq.s32.totalorder %s27, 0
      %p54 = por %p52, %p53
      %s56 = sadd.s32 %s55, 1
      %p59 = scmp.eq.s32.totalorder %s21, 1
      %p60 = scmp.ne.s32.totalorder %s55, %s57
      %p61 = scmp.eq.s32.totalorder %s21, 0
      %p62 = por %p60, %p61
      %p63 = scmp.ne.s32.totalorder %s55, %s57
      %p64 = scmp.eq.s32.totalorder %s26, 1
      %p65 = por %p63, %p64
      %p66 = scmp.ne.s32.totalorder %s57, %s58
      %p67 = scmp.eq.s32.totalorder %s26, 0
      %p68 = por %p66, %p67
      %p69 = scmp.ne.s32.totalorder %s57, %s58
      %p70 = scmp.eq.s32.totalorder %s27, 1
      %p71 = por %p69, %p70
      %p73 = scmp.ne.s32.totalorder %s58, %s72
      %p74 = scmp.eq.s32.totalorder %s27, 0
      %p75 = por %p73, %p74
      %s77 = sadd.s32 %s76, 1
      %p80 = scmp.eq.s32.totalorder %s21, 1
      %p81 = scmp.ne.s32.totalorder %s76, %s78
      %p82 = scmp.eq.s32.totalorder %s21, 0
      %p83 = por %p81, %p82
      %p84 = scmp.ne.s32.totalorder %s76, %s78
      %p85 = scmp.eq.s32.totalorder %s26, 1
      %p86 = por %p84, %p85
      %p87 = scmp.ne.s32.totalorder %s78, %s79
      %p88 = scmp.eq.s32.totalorder %s26, 0
      %p89 = por %p87, %p88
      %p90 = scmp.ne.s32.totalorder %s78, %s79
      %p91 = scmp.eq.s32.totalorder %s27, 1
      %p92 = por %p90, %p91
      %p94 = scmp.ne.s32.totalorder %s79, %s93
      %p95 = scmp.eq.s32.totalorder %s27, 0
      %p96 = por %p94, %p95
      %s98 = sadd.s32 %s97, 1
      %p101 = scmp.eq.s32.totalorder %s21, 1
      %p102 = scmp.ne.s32.totalorder %s97, %s99
      %p103 = scmp.eq.s32.totalorder %s21, 0
      %p104 = por %p102, %p103
      %p105 = scmp.ne.s32.totalorder %s97, %s99
      %p106 = scmp.eq.s32.totalorder %s26, 1
      %p107 = por %p105, %p106
      %p108 = scmp.ne.s32.totalorder %s99, %s100
      %p109 = scmp.eq.s32.totalorder %s26, 0
      %p110 = por %p108, %p109
      %p111 = scmp.ne.s32.totalorder %s99, %s100
      %p112 = scmp.eq.s32.totalorder %s27, 1
      %p113 = por %p111, %p112
      %p115 = scmp.ne.s32.totalorder %s100, %s114
      %p116 = scmp.eq.s32.totalorder %s27, 0
      %p117 = por %p115, %p116
      %s119 = sadd.s32 %s118, 1
      %p122 = scmp.eq.s32.totalorder %s21, 1
      %p123 = scmp.ne.s32.totalorder %s118, %s120
      %p124 = scmp.eq.s32.totalorder %s21, 0
      %p125 = por %p123, %p124
      %p126 = scmp.ne.s32.totalorder %s118, %s120
      %p127 = scmp.eq.s32.totalorder %s26, 1
      %p128 = por %p126, %p127
      %p129 = scmp.ne.s32.totalorder %s120, %s121
      %p130 = scmp.eq.s32.totalorder %s26, 0
      %p131 = por %p129, %p130
      %p132 = scmp.ne.s32.totalorder %s120, %s121
      %p133 = scmp.eq.s32.totalorder %s27, 1
      %p134 = por %p132, %p133
      %p136 = scmp.ne.s32.totalorder %s121, %s135
      %p137 = scmp.eq.s32.totalorder %s27, 0
      %p138 = por %p136, %p137
      %s140 = sadd.s32 %s139, 1
      %p143 = scmp.eq.s32.totalorder %s21, 1
      %p144 = scmp.ne.s32.totalorder %s139, %s141
      %p145 = scmp.eq.s32.totalorder %s21, 0
      %p146 = por %p144, %p145
      %p147 = scmp.ne.s32.totalorder %s139, %s141
      %p148 = scmp.eq.s32.totalorder %s26, 1
      %p149 = por %p147, %p148
      %p150 = scmp.ne.s32.totalorder %s141, %s142
      %p151 = scmp.eq.s32.totalorder %s26, 0
      %p152 = por %p150, %p151
      %p153 = scmp.ne.s32.totalorder %s141, %s142
      %p154 = scmp.eq.s32.totalorder %s27, 1
      %p155 = por %p153, %p154
      %p157 = scmp.ne.s32.totalorder %s142, %s156
      %p158 = scmp.eq.s32.totalorder %s27, 0
      %p159 = por %p157, %p158
      %s161 = sadd.s32 %s160, 1
      %p164 = scmp.eq.s32.totalorder %s21, 1
      %p165 = scmp.ne.s32.totalorder %s160, %s162
      %p166 = scmp.eq.s32.totalorder %s21, 0
      %p167 = por %p165, %p166
      %p168 = scmp.ne.s32.totalorder %s160, %s162
      %p169 = scmp.eq.s32.totalorder %s26, 1
      %p170 = por %p168, %p169
      %p171 = scmp.ne.s32.totalorder %s162, %s163
      %p172 = scmp.eq.s32.totalorder %s26, 0
      %p173 = por %p171, %p172
      %p174 = scmp.ne.s32.totalorder %s162, %s163
      %p175 = scmp.eq.s32.totalorder %s27, 1
      %p176 = por %p174, %p175
      %p178 = scmp.ne.s32.totalorder %s163, %s177
      %p179 = scmp.eq.s32.totalorder %s27, 0
      %p180 = por %p178, %p179
      %s182 = sadd.s32 %s181, 1
      %p185 = scmp.eq.s32.totalorder %s21, 1
      %p186 = scmp.ne.s32.totalorder %s181, %s183
      %p187 = scmp.eq.s32.totalorder %s21, 0
      %p188 = por %p186, %p187
      %p189 = scmp.ne.s32.totalorder %s181, %s183
      %p190 = scmp.eq.s32.totalorder %s26, 1
      %p191 = por %p189, %p190
      %p192 = scmp.ne.s32.totalorder %s183, %s184
      %p193 = scmp.eq.s32.totalorder %s26, 0
      %p194 = por %p192, %p193
      %p195 = scmp.ne.s32.totalorder %s183, %s184
      %p196 = scmp.eq.s32.totalorder %s27, 1
      %p197 = por %p195, %p196
      %p199 = scmp.ne.s32.totalorder %s184, %s198
      %p200 = scmp.eq.s32.totalorder %s27, 0
      %p201 = por %p199, %p200
      %s203 = sadd.s32 %s202, 1
      %p206 = scmp.eq.s32.totalorder %s21, 1
      %p207 = scmp.ne.s32.totalorder %s202, %s204
      %p208 = scmp.eq.s32.totalorder %s21, 0
      %p209 = por %p207, %p208
      %p210 = scmp.ne.s32.totalorder %s202, %s204
      %p211 = scmp.eq.s32.totalorder %s26, 1
      %p212 = por %p210, %p211
      %p213 = scmp.ne.s32.totalorder %s204, %s205
      %p214 = scmp.eq.s32.totalorder %s26, 0
      %p215 = por %p213, %p214
      %p216 = scmp.ne.s32.totalorder %s204, %s205
      %p217 = scmp.eq.s32.totalorder %s27, 1
      %p218 = por %p216, %p217
      %p220 = scmp.ne.s32.totalorder %s205, %s219
      %p221 = scmp.eq.s32.totalorder %s27, 0
      %p222 = por %p220, %p221
      %s224 = sadd.s32 %s223, 1
      %p227 = scmp.eq.s32.totalorder %s21, 1
      %p228 = scmp.ne.s32.totalorder %s223, %s225
      %p229 = scmp.eq.s32.totalorder %s21, 0
      %p230 = por %p228, %p229
      %p231 = scmp.ne.s32.totalorder %s223, %s225
      %p232 = scmp.eq.s32.totalorder %s26, 1
      %p233 = por %p231, %p232
      %p234 = scmp.ne.s32.totalorder %s225, %s226
      %p235 = scmp.eq.s32.totalorder %s26, 0
      %p236 = por %p234, %p235
      %p237 = scmp.ne.s32.totalorder %s225, %s226
      %p238 = scmp.eq.s32.totalorder %s27, 1
      %p239 = por %p237, %p238
      %p241 = scmp.ne.s32.totalorder %s226, %s240
      %p242 = scmp.eq.s32.totalorder %s27, 0
      %p243 = por %p241, %p242
      %s245 = sadd.s32 %s244, 1
      %p248 = scmp.eq.s32.totalorder %s21, 1
      %p249 = scmp.ne.s32.totalorder %s244, %s246
      %p250 = scmp.eq.s32.totalorder %s21, 0
      %p251 = por %p249, %p250
      %p252 = scmp.ne.s32.totalorder %s244, %s246
      %p253 = scmp.eq.s32.totalorder %s26, 1
      %p254 = por %p252, %p253
      %p255 = scmp.ne.s32.totalorder %s246, %s247
      %p256 = scmp.eq.s32.totalorder %s26, 0
      %p257 = por %p255, %p256
      %p258 = scmp.ne.s32.totalorder %s246, %s247
      %p259 = scmp.eq.s32.totalorder %s27, 1
      %p260 = por %p258, %p259
      %p262 = scmp.ne.s32.totalorder %s247, %s261
      %p263 = scmp.eq.s32.totalorder %s27, 0
      %p264 = por %p262, %p263
      %s266 = sadd.s32 %s265, 1
      %p269 = scmp.eq.s32.totalorder %s21, 1
      %p270 = scmp.ne.s32.totalorder %s265, %s267
      %p271 = scmp.eq.s32.totalorder %s21, 0
      %p272 = por %p270, %p271
      %p273 = scmp.ne.s32.totalorder %s265, %s267
      %p274 = scmp.eq.s32.totalorder %s26, 1
      %p275 = por %p273, %p274
      %p276 = scmp.ne.s32.totalorder %s267, %s268
      %p277 = scmp.eq.s32.totalorder %s26, 0
      %p278 = por %p276, %p277
      %p279 = scmp.ne.s32.totalorder %s267, %s268
      %p280 = scmp.eq.s32.totalorder %s27, 1
      %p281 = por %p279, %p280
      %p283 = scmp.ne.s32.totalorder %s268, %s282
      %p284 = scmp.eq.s32.totalorder %s27, 0
      %p285 = por %p283, %p284
      %s286 = ssub.s32 %s21, %s28
      %p287 = scmp.eq.s32.totalorder %s286, 0
      %s289 = sadd.s32 %s288, 1
      %s290 = scalar_select %p287, %s288, %s289
      %p293 = pneg %p287
      %p294 = scmp.eq.s32.totalorder %s21, 1
      %p295 = por %p293, %p294
      %p296 = scmp.ne.s32.totalorder %s288, %s291
      %p297 = scmp.eq.s32.totalorder %s21, 0
      %p298 = por %p296, %p297
      %p299 = scmp.ne.s32.totalorder %s288, %s291
      %p300 = scmp.eq.s32.totalorder %s26, 1
      %p301 = por %p299, %p300
      %p302 = scmp.ne.s32.totalorder %s291, %s292
      %p303 = scmp.eq.s32.totalorder %s26, 0
      %p304 = por %p302, %p303
      %p305 = scmp.ne.s32.totalorder %s291, %s292
      %p306 = scmp.eq.s32.totalorder %s27, 1
      %p307 = por %p305, %p306
      %p309 = scmp.ne.s32.totalorder %s292, %s308
      %p310 = scmp.eq.s32.totalorder %s27, 0
      %p311 = por %p309, %p310
      %p312 = scmp.le.s32.totalorder 1, %s21
      %p313 = scmp.lt.s32.totalorder %s21, 3
      %p314 = pnand %p312, %p313
      %p315 = pneg %p314
      // Predicated region
      $region9: #{mobilenetv2_mixwrap_forward.1} parent=5 // pred_check
        _
      $region10: #{mobilenetv2_mixwrap_forward.1} parent=5 // pred_check_branch
        %317 = sbr.rel (%p314) target = $region12
      $region11: #{mobilenetv2_mixwrap_forward.1} parent=5 // pred_region
        %s318 = ssub.s32 %s21, 1
        // Predicated region
        $region13: #{mobilenetv2_mixwrap_forward.1} parent=11 // pred_check
          %p319 = pneg %p68
        $region14: #{mobilenetv2_mixwrap_forward.1} parent=11 // pred_check_branch
          %321 = sbr.rel (%p319) target = $region16
        $region15: #{mobilenetv2_mixwrap_forward.1} parent=11 // pred_region
          _
        $region16: #{mobilenetv2_mixwrap_forward.1} parent=11 // pred_fallthru
          _
        // Predicated region
        $region17: #{mobilenetv2_mixwrap_forward.1} parent=11 // pred_check
          %p322 = pneg %p89
        $region18: #{mobilenetv2_mixwrap_forward.1} parent=11 // pred_check_branch
          %324 = sbr.rel (%p322) target = $region20
        $region19: #{mobilenetv2_mixwrap_forward.1} parent=11 // pred_region
          _
        $region20: #{mobilenetv2_mixwrap_forward.1} parent=11 // pred_fallthru
          _
        // Predicated region
        $region21: #{mobilenetv2_mixwrap_forward.1} parent=11 // pred_check
          %p325 = pneg %p110
        $region22: #{mobilenetv2_mixwrap_forward.1} parent=11 // pred_check_branch
          %327 = sbr.rel (%p325) target = $region24
        $region23: #{mobilenetv2_mixwrap_forward.1} parent=11 // pred_region
          _
        $region24: #{mobilenetv2_mixwrap_forward.1} parent=11 // pred_fallthru
          _
        // Predicated region
        $region25: #{mobilenetv2_mixwrap_forward.1} parent=11 // pred_check
          %p328 = pneg %p131
        $region26: #{mobilenetv2_mixwrap_forward.1} parent=11 // pred_check_branch
          %330 = sbr.rel (%p328) target = $region28
        $region27: #{mobilenetv2_mixwrap_forward.1} parent=11 // pred_region
          _
        $region28: #{mobilenetv2_mixwrap_forward.1} parent=11 // pred_fallthru
          _
        // Predicated region
        $region29: #{mobilenetv2_mixwrap_forward.1} parent=11 // pred_check
          %p331 = pneg %p152
        $region30: #{mobilenetv2_mixwrap_forward.1} parent=11 // pred_check_branch
          %333 = sbr.rel (%p331) target = $region32
        $region31: #{mobilenetv2_mixwrap_forward.1} parent=11 // pred_region
          _
        $region32: #{mobilenetv2_mixwrap_forward.1} parent=11 // pred_fallthru
          _
        // Predicated region
        $region33: #{mobilenetv2_mixwrap_forward.1} parent=11 // pred_check
          %p334 = pneg %p173
        $region34: #{mobilenetv2_mixwrap_forward.1} parent=11 // pred_check_branch
          %336 = sbr.rel (%p334) target = $region36
        $region35: #{mobilenetv2_mixwrap_forward.1} parent=11 // pred_region
          _
        $region36: #{mobilenetv2_mixwrap_forward.1} parent=11 // pred_fallthru
          _
        // Predicated region
        $region37: #{mobilenetv2_mixwrap_forward.1} parent=11 // pred_check
          %p337 = pneg %p194
        $region38: #{mobilenetv2_mixwrap_forward.1} parent=11 // pred_check_branch
          %339 = sbr.rel (%p337) target = $region40
        $region39: #{mobilenetv2_mixwrap_forward.1} parent=11 // pred_region
          _
        $region40: #{mobilenetv2_mixwrap_forward.1} parent=11 // pred_fallthru
          _
        // Predicated region
        $region41: #{mobilenetv2_mixwrap_forward.1} parent=11 // pred_check
          %p340 = pneg %p215
        $region42: #{mobilenetv2_mixwrap_forward.1} parent=11 // pred_check_branch
          %342 = sbr.rel (%p340) target = $region44
        $region43: #{mobilenetv2_mixwrap_forward.1} parent=11 // pred_region
          _
        $region44: #{mobilenetv2_mixwrap_forward.1} parent=11 // pred_fallthru
          _
        // Predicated region
        $region45: #{mobilenetv2_mixwrap_forward.1} parent=11 // pred_check
          %p343 = pneg %p236
        $region46: #{mobilenetv2_mixwrap_forward.1} parent=11 // pred_check_branch
          %345 = sbr.rel (%p343) target = $region48
        $region47: #{mobilenetv2_mixwrap_forward.1} parent=11 // pred_region
          _
        $region48: #{mobilenetv2_mixwrap_forward.1} parent=11 // pred_fallthru
          _
        // Predicated region
        $region49: #{mobilenetv2_mixwrap_forward.1} parent=11 // pred_check
          %p346 = pneg %p257
        $region50: #{mobilenetv2_mixwrap_forward.1} parent=11 // pred_check_branch
          %348 = sbr.rel (%p346) target = $region52
        $region51: #{mobilenetv2_mixwrap_forward.1} parent=11 // pred_region
          _
        $region52: #{mobilenetv2_mixwrap_forward.1} parent=11 // pred_fallthru
          _
        // Predicated region
        $region53: #{mobilenetv2_mixwrap_forward.1} parent=11 // pred_check
          %p349 = pneg %p278
        $region54: #{mobilenetv2_mixwrap_forward.1} parent=11 // pred_check_branch
          %351 = sbr.rel (%p349) target = $region56
        $region55: #{mobilenetv2_mixwrap_forward.1} parent=11 // pred_region
          _
        $region56: #{mobilenetv2_mixwrap_forward.1} parent=11 // pred_fallthru
          _
      $region12: #{mobilenetv2_mixwrap_forward.1} parent=5 // pred_fallthru
        _
      %p352 = scmp.lt.s32.totalorder %s21, 2
      // Predicated region
      $region57: #{mobilenetv2_mixwrap_forward.1} parent=5 // pred_check
        %p353 = pneg %p352
      $region58: #{mobilenetv2_mixwrap_forward.1} parent=5 // pred_check_branch
        %355 = sbr.rel (%p353) target = $region60
      $region59: #{mobilenetv2_mixwrap_forward.1} parent=5 // pred_region
        // Predicated region
        $region61: #{mobilenetv2_mixwrap_forward.1} parent=59 // pred_check
          %p356 = pneg %p41
        $region62: #{mobilenetv2_mixwrap_forward.1} parent=59 // pred_check_branch
          %358 = sbr.rel (%p356) target = $region64
        $region63: #{mobilenetv2_mixwrap_forward.1} parent=59 // pred_region
          %p359 = scmp.lt.s32.totalorder %s21, 1
          %s360 = scalar_select %p359, %s21, 1
          %s361 = smul.addr %s360, 13
          %s362 = smul.addr %s361, 4
          %s363 = scalar_lea.vmem %s0, %s362
        $region64: #{mobilenetv2_mixwrap_forward.1} parent=59 // pred_fallthru
          _
      $region60: #{mobilenetv2_mixwrap_forward.1} parent=5 // pred_fallthru
        _
      %p364 = scmp.le.s32.totalorder 1, %s21
      %p365 = scmp.lt.s32.totalorder %s21, 3
      %p366 = pnand %p364, %p365
      %p367 = pneg %p366
      // Predicated region
      $region65: #{mobilenetv2_mixwrap_forward.1} parent=5 // pred_check
        _
      $region66: #{mobilenetv2_mixwrap_forward.1} parent=5 // pred_check_branch
        %369 = sbr.rel (%p366) target = $region68
      $region67: #{mobilenetv2_mixwrap_forward.1} parent=5 // pred_region
        %s370 = ssub.s32 %s21, 1
        %p371 = scmp.lt.s32.totalorder %s26, 1
        %s372 = scalar_select %p371, %s26, 1
        %s373 = smul.addr %s372, 13
        %s374 = smul.addr %s373, 4
        %s375 = scalar_lea.vmem %s0, %s374
        %p376 = pneg %p47
        %p377 = pneg %p44
        %p378 = pneg %p68
        %p379 = pneg %p65
        %p380 = pneg %p89
        %p381 = pneg %p86
        %p382 = pneg %p110
        %p383 = pneg %p107
        %p384 = pneg %p131
        %p385 = pneg %p128
        %p386 = pneg %p152
        %p387 = pneg %p149
        %p388 = pneg %p173
        %p389 = pneg %p170
        %p390 = pneg %p194
        %p391 = pneg %p191
        %p392 = pneg %p215
        %p393 = pneg %p212
        %p394 = pneg %p236
        %p395 = pneg %p233
        %p396 = pneg %p257
        %p397 = pneg %p254
        %p398 = pneg %p278
        %p399 = pneg %p275
        %p400 = pneg %p304
        %p401 = pneg %p301
        %s402 = sand.u32 %s291, 1
        %s403 = scalar_lea.sflag [#allocation5], %s402
        %s404 = sand.u32 %s291, 1
        %s405 = scalar_lea.vmem [#allocation4], %s404
        %p406 = scmp.lt.s32.totalorder %s26, 1
        %s407 = scalar_select %p406, %s26, 1
        %s408 = smul.addr %s407, 13
        %s409 = smul.addr %s408, 4
        %s410 = scalar_lea.vmem %s0, %s409
        %v412 = vld [vmem:[%s1] sm:$0xff]
        %v413 = vld [vmem:[%s1 + $0x8] sm:$0xff]
        %v414 = vld [vmem:[%s1 + $0x10] sm:$0xff]
        %v415 = vld [vmem:[%s1 + $0x18] sm:$0xff]
        %v416 = vld [vmem:[%s1 + $0x20] sm:$0xff]
        %v417 = vld [vmem:[%s1 + $0x28] sm:$0xff]
        %v418 = vld [vmem:[%s1 + $0x30] sm:$0xff]
        %v419 = vld [vmem:[%s1 + $0x38] sm:$0xff]
        %v420 = vld [vmem:[%s1 + $0x40] sm:$0xff]
        %v421 = vld [vmem:[%s1 + $0x48] sm:$0xff]
        %v422 = vld [vmem:[%s1 + $0x50] sm:$0xff]
        %v423 = vld [vmem:[%s1 + $0x58] sm:$0xff]
        %v424 = vld [vmem:[%s1 + $0x60] sm:$0xf]
        %v425 = vld [vmem:[%s410] sm:$0xf]
        %v426 = vld [vmem:[%s410 + $0x4] sm:$0xf]
        %v427 = vld [vmem:[%s410 + $0x8] sm:$0xf]
        %v428 = vld [vmem:[%s410 + $0xc] sm:$0xf]
        %v429 = vld [vmem:[%s410 + $0x10] sm:$0xf]
        %v430 = vld [vmem:[%s410 + $0x14] sm:$0xf]
        %v431 = vld [vmem:[%s410 + $0x18] sm:$0xf]
        %v432 = vld [vmem:[%s410 + $0x1c] sm:$0xf]
        %v433 = vld [vmem:[%s410 + $0x20] sm:$0xf]
        %v434 = vld [vmem:[%s410 + $0x24] sm:$0xf]
        %v435 = vld [vmem:[%s410 + $0x28] sm:$0xf]
        %v436 = vld [vmem:[%s410 + $0x2c] sm:$0xf]
        %v437 = vld [vmem:[%s410 + $0x30] sm:$0x3]
        %v438 = vld [vmem:[%s2] sm:$0xf]
        %v439 = vld [vmem:[%s2 + $0x4] sm:$0xf]
        %v440 = vld [vmem:[%s2 + $0x8] sm:$0xf]
        %v441 = vld [vmem:[%s2 + $0xc] sm:$0xf]
        %v442 = vld [vmem:[%s2 + $0x10] sm:$0xf]
        %v443 = vld [vmem:[%s2 + $0x14] sm:$0xf]
        %v444 = vld [vmem:[%s2 + $0x18] sm:$0xf]
        %v445 = vld [vmem:[%s2 + $0x1c] sm:$0xf]
        %v446 = vld [vmem:[%s2 + $0x20] sm:$0xf]
        %v447 = vld [vmem:[%s2 + $0x24] sm:$0xf]
        %v448 = vld [vmem:[%s2 + $0x28] sm:$0xf]
        %v449 = vld [vmem:[%s2 + $0x2c] sm:$0xf]
        %v450 = vld [vmem:[%s2 + $0x30] sm:$0xf]
        %v451 = vld [vmem:[%s2 + $0x34] sm:$0xf]
        %v452 = vld [vmem:[%s2 + $0x38] sm:$0xf]
        %v453 = vld [vmem:[%s2 + $0x3c] sm:$0xf]
        %v454 = vld [vmem:[%s3] sm:$0x1]
        %v456 = vlaneseq
        %v457 = vshrl.u32 %v456, 7
        %v458 = vsub.s32 0, %v457
        %v459 = vrot.slane %v454, %v458
        %v474 = vunpack.c.l.b16 %v425
        %v475 = vunpack.c.l.b16 %v426
        %v476 = vunpack.c.l.b16 %v427
        %v477 = vunpack.c.l.b16 %v428
        %v478 = vunpack.c.l.b16 %v429
        %v479 = vunpack.c.l.b16 %v430
        %v480 = vunpack.c.l.b16 %v431
        %v481 = vunpack.c.l.b16 %v432
        %v482 = vunpack.c.l.b16 %v433
        %v483 = vunpack.c.l.b16 %v434
        %v484 = vunpack.c.l.b16 %v435
        %v485 = vunpack.c.l.b16 %v436
        %v486 = vunpack.c.l.b16 %v437
        %v487 = vpack.c.b16 %v475, %v474
        %v488 = vpack.c.b16 %v477, %v476
        %v489 = vpack.c.b16 %v479, %v478
        %v490 = vpack.c.b16 %v481, %v480
        %v491 = vpack.c.b16 %v483, %v482
        %v492 = vpack.c.b16 %v485, %v484
        %v493 = vpack.c.b16 %v486, %v486
        %v517 = vunpack.c.l.b16 %v438
        %v518 = vunpack.c.l.b16 %v439
        %v519 = vunpack.c.l.b16 %v440
        %v520 = vunpack.c.l.b16 %v441
        %v521 = vunpack.c.l.b16 %v442
        %v522 = vunpack.c.l.b16 %v443
        %v523 = vunpack.c.l.b16 %v444
        %v524 = vunpack.c.l.b16 %v445
        %v525 = vunpack.c.l.b16 %v446
        %v526 = vunpack.c.l.b16 %v447
        %v527 = vunpack.c.l.b16 %v448
        %v528 = vunpack.c.l.b16 %v449
        %v529 = vunpack.c.l.b16 %v450
        %v530 = vunpack.c.l.b16 %v451
        %v531 = vunpack.c.l.b16 %v452
        %v532 = vunpack.c.l.b16 %v453
        %v533 = vpack.c.b16 %v518, %v517
        %v534 = vpack.c.b16 %v520, %v519
        %v535 = vpack.c.b16 %v522, %v521
        %v536 = vpack.c.b16 %v524, %v523
        %v537 = vpack.c.b16 %v526, %v525
        %v538 = vpack.c.b16 %v528, %v527
        %v539 = vpack.c.b16 %v530, %v529
        %v540 = vpack.c.b16 %v532, %v531
        %549 = vmatprep.subr.bf16.mxu0 0
        %550 = vmatpush1.bf16.msra.mxu0 %v540
        %551 = vmatprep.subr.bf16.mxu0 0
        %552 = vmatpush1.bf16.msra.mxu0 %v539
        %553 = vmatprep.subr.bf16.mxu0 0
        %554 = vmatpush1.bf16.msra.mxu0 %v538
        %555 = vmatprep.subr.bf16.mxu0 0
        %556 = vmatpush1.bf16.msra.mxu0 %v537
        %557 = vmatprep.subr.bf16.mxu0 0
        %558 = vmatpush1.bf16.msra.mxu0 %v536
        %559 = vmatprep.subr.bf16.mxu0 0
        %560 = vmatpush1.bf16.msra.mxu0 %v535
        %561 = vmatprep.subr.bf16.mxu0 0
        %562 = vmatpush1.bf16.msra.mxu0 %v534
        %563 = vmatprep.subr.bf16.mxu0 0
        %564 = vmatpush1.bf16.msra.mxu0 %v533
        %565 = vmatprep.subr.bf16.mxu0 0
        %566 = vmatpush2.bf16.msra.mxu0 0
        %567 = vmatprep.subr.bf16.mxu0 0
        %568 = vmatpush2.bf16.msra.mxu0 0
        %569 = vmatprep.subr.bf16.mxu0 0
        %570 = vmatpush2.bf16.msra.mxu0 0
        %571 = vmatprep.subr.bf16.mxu0 0
        %572 = vmatpush2.bf16.msra.mxu0 0
        %573 = vmatprep.subr.bf16.mxu0 0
        %574 = vmatpush2.bf16.msra.mxu0 0
        %575 = vmatprep.subr.bf16.mxu0 0
        %576 = vmatpush2.bf16.msra.mxu0 0
        %577 = vmatprep.subr.bf16.mxu0 0
        %578 = vmatpush2.bf16.msra.mxu0 0
        %579 = vmatprep.subr.bf16.mxu0 0
        %580 = vmatpush2.bf16.msra.mxu0 0
        %581 = vmatprep.mubr.bf16.mxu0 0
        %582 = vmatmul.mubr.bf16.gmra.mxu0 %v487
        %v583 = vpop.f32.mrf.mxu0
        %v584 = vadd.f32 %v459, %v583
        %v585 = vpop.f32.mrf.mxu0
        %v586 = vpop.f32.mrf.mxu0
        %v587 = vadd.f32 %v459, %v586
        %v588 = vpop.f32.mrf.mxu0
        %589 = vmatprep.mubr.bf16.mxu0 0
        %590 = vmatmul.mubr.bf16.gmra.mxu0 %v488
        %v591 = vpop.f32.mrf.mxu0
        %v592 = vadd.f32 %v459, %v591
        %v593 = vpop.f32.mrf.mxu0
        %v594 = vpop.f32.mrf.mxu0
        %v595 = vadd.f32 %v459, %v594
        %v596 = vpop.f32.mrf.mxu0
        %597 = vmatprep.mubr.bf16.mxu0 0
        %598 = vmatmul.mubr.bf16.gmra.mxu0 %v489
        %v599 = vpop.f32.mrf.mxu0
        %v600 = vadd.f32 %v459, %v599
        %v601 = vpop.f32.mrf.mxu0
        %v602 = vpop.f32.mrf.mxu0
        %v603 = vadd.f32 %v459, %v602
        %v604 = vpop.f32.mrf.mxu0
        %605 = vmatprep.mubr.bf16.mxu0 0
        %606 = vmatmul.mubr.bf16.gmra.mxu0 %v490
        %v607 = vpop.f32.mrf.mxu0
        %v608 = vadd.f32 %v459, %v607
        %v609 = vpop.f32.mrf.mxu0
        %v610 = vpop.f32.mrf.mxu0
        %v611 = vadd.f32 %v459, %v610
        %v612 = vpop.f32.mrf.mxu0
        %613 = vmatprep.mubr.bf16.mxu0 0
        %614 = vmatmul.mubr.bf16.gmra.mxu0 %v491
        %v615 = vpop.f32.mrf.mxu0
        %v616 = vadd.f32 %v459, %v615
        %v617 = vpop.f32.mrf.mxu0
        %v618 = vpop.f32.mrf.mxu0
        %v619 = vadd.f32 %v459, %v618
        %v620 = vpop.f32.mrf.mxu0
        %621 = vmatprep.mubr.bf16.mxu0 0
        %622 = vmatmul.mubr.bf16.gmra.mxu0 %v492
        %v623 = vpop.f32.mrf.mxu0
        %v624 = vadd.f32 %v459, %v623
        %v625 = vpop.f32.mrf.mxu0
        %v626 = vpop.f32.mrf.mxu0
        %v627 = vadd.f32 %v459, %v626
        %v628 = vpop.f32.mrf.mxu0
        %629 = vmatprep.mubr.bf16.mxu0 0
        %630 = vmatmul.mubr.bf16.gmra.mxu0 %v493
        %v631 = vpop.f32.mrf.mxu0
        %v632 = vadd.f32 %v459, %v631
        %v633 = vpop.f32.mrf.mxu0
        %v634 = vpop.f32.mrf.mxu0
        %v635 = vpop.f32.mrf.mxu0
        %636 = vdwg.mxu0
        %v637 = vmax.f32 %v584, 0.0
        %v638 = vmax.f32 %v587, 0.0
        %v639 = vmax.f32 %v592, 0.0
        %v640 = vmax.f32 %v595, 0.0
        %v641 = vmax.f32 %v600, 0.0
        %v642 = vmax.f32 %v603, 0.0
        %v643 = vmax.f32 %v608, 0.0
        %v644 = vmax.f32 %v611, 0.0
        %v645 = vmax.f32 %v616, 0.0
        %v646 = vmax.f32 %v619, 0.0
        %v647 = vmax.f32 %v624, 0.0
        %v648 = vmax.f32 %v627, 0.0
        %v649 = vmax.f32 %v632, 0.0
        %v650 = vmin.f32 %v637, 6.0
        %v651 = vmin.f32 %v638, 6.0
        %v652 = vmin.f32 %v639, 6.0
        %v653 = vmin.f32 %v640, 6.0
        %v654 = vmin.f32 %v641, 6.0
        %v655 = vmin.f32 %v642, 6.0
        %v656 = vmin.f32 %v643, 6.0
        %v657 = vmin.f32 %v644, 6.0
        %v658 = vmin.f32 %v645, 6.0
        %v659 = vmin.f32 %v646, 6.0
        %v660 = vmin.f32 %v647, 6.0
        %v661 = vmin.f32 %v648, 6.0
        %v662 = vmin.f32 %v649, 6.0
        %663 = vst [vmem:[#allocation2] sm:$0xff] %v650
        %664 = vst [vmem:[#allocation2 + $0x8] sm:$0xff] %v651
        %665 = vst [vmem:[#allocation2 + $0x10] sm:$0xff] %v652
        %666 = vst [vmem:[#allocation2 + $0x18] sm:$0xff] %v653
        %667 = vst [vmem:[#allocation2 + $0x20] sm:$0xff] %v654
        %668 = vst [vmem:[#allocation2 + $0x28] sm:$0xff] %v655
        %669 = vst [vmem:[#allocation2 + $0x30] sm:$0xff] %v656
        %670 = vst [vmem:[#allocation2 + $0x38] sm:$0xff] %v657
        %671 = vst [vmem:[#allocation2 + $0x40] sm:$0xff] %v658
        %672 = vst [vmem:[#allocation2 + $0x48] sm:$0xff] %v659
        %673 = vst [vmem:[#allocation2 + $0x50] sm:$0xff] %v660
        %674 = vst [vmem:[#allocation2 + $0x58] sm:$0xff] %v661
        %675 = vst [vmem:[#allocation2 + $0x60] sm:$0xf] %v662
        %v676 = vpack.c.bf16 %v651, %v650
        %v677 = vpack.c.bf16 %v653, %v652
        %v678 = vpack.c.bf16 %v655, %v654
        %v679 = vpack.c.bf16 %v657, %v656
        %v680 = vpack.c.bf16 %v659, %v658
        %v681 = vpack.c.bf16 %v661, %v660
        %v682 = vpack.c.bf16 %v662, %v662
        %v683 = vld [vmem:[%s4] sm:$0xf]
        %v684 = vld [vmem:[%s4 + $0x4] sm:$0xf]
        %v685 = vld [vmem:[%s4 + $0x8] sm:$0xf]
        %v686 = vld [vmem:[%s4 + $0xc] sm:$0xf]
        %v687 = vld [vmem:[%s4 + $0x10] sm:$0xf]
        %v688 = vld [vmem:[%s4 + $0x14] sm:$0xf]
        %v689 = vld [vmem:[%s4 + $0x18] sm:$0xf]
        %v690 = vld [vmem:[%s4 + $0x1c] sm:$0xf]
        %v691 = vld [vmem:[%s4 + $0x20] sm:$0xf]
        %v692 = vld [vmem:[%s4 + $0x24] sm:$0xf]
        %v693 = vld [vmem:[%s4 + $0x28] sm:$0xf]
        %v694 = vld [vmem:[%s4 + $0x2c] sm:$0xf]
        %v695 = vld [vmem:[%s4 + $0x30] sm:$0xf]
        %v696 = vld [vmem:[%s4 + $0x34] sm:$0xf]
        %v697 = vld [vmem:[%s4 + $0x38] sm:$0xf]
        %v698 = vld [vmem:[%s4 + $0x3c] sm:$0xf]
        %v699 = vld [vmem:[%s5] sm:$0x1]
        %v701 = vlaneseq
        %v702 = vshrl.u32 %v701, 7
        %v703 = vsub.s32 0, %v702
        %v704 = vrot.slane %v699, %v703
        %v722 = vunpack.c.l.b16 %v683
        %v723 = vunpack.c.l.b16 %v684
        %v724 = vunpack.c.l.b16 %v685
        %v725 = vunpack.c.l.b16 %v686
        %v726 = vunpack.c.l.b16 %v687
        %v727 = vunpack.c.l.b16 %v688
        %v728 = vunpack.c.l.b16 %v689
        %v729 = vunpack.c.l.b16 %v690
        %v730 = vunpack.c.l.b16 %v691
        %v731 = vunpack.c.l.b16 %v692
        %v732 = vunpack.c.l.b16 %v693
        %v733 = vunpack.c.l.b16 %v694
        %v734 = vunpack.c.l.b16 %v695
        %v735 = vunpack.c.l.b16 %v696
        %v736 = vunpack.c.l.b16 %v697
        %v737 = vunpack.c.l.b16 %v698
        %v738 = vpack.c.b16 %v723, %v722
        %v739 = vpack.c.b16 %v725, %v724
        %v740 = vpack.c.b16 %v727, %v726
        %v741 = vpack.c.b16 %v729, %v728
        %v742 = vpack.c.b16 %v731, %v730
        %v743 = vpack.c.b16 %v733, %v732
        %v744 = vpack.c.b16 %v735, %v734
        %v745 = vpack.c.b16 %v737, %v736
        %754 = vmatprep.subr.bf16.mxu0 0
        %755 = vmatpush1.bf16.msra.mxu0 %v745
        %756 = vmatprep.subr.bf16.mxu0 0
        %757 = vmatpush1.bf16.msra.mxu0 %v744
        %758 = vmatprep.subr.bf16.mxu0 0
        %759 = vmatpush1.bf16.msra.mxu0 %v743
        %760 = vmatprep.subr.bf16.mxu0 0
        %761 = vmatpush1.bf16.msra.mxu0 %v742
        %762 = vmatprep.subr.bf16.mxu0 0
        %763 = vmatpush1.bf16.msra.mxu0 %v741
        %764 = vmatprep.subr.bf16.mxu0 0
        %765 = vmatpush1.bf16.msra.mxu0 %v740
        %766 = vmatprep.subr.bf16.mxu0 0
        %767 = vmatpush1.bf16.msra.mxu0 %v739
        %768 = vmatprep.subr.bf16.mxu0 0
        %769 = vmatpush1.bf16.msra.mxu0 %v738
        %770 = vmatprep.subr.bf16.mxu0 0
        %771 = vmatpush2.bf16.msra.mxu0 0
        %772 = vmatprep.subr.bf16.mxu0 0
        %773 = vmatpush2.bf16.msra.mxu0 0
        %774 = vmatprep.subr.bf16.mxu0 0
        %775 = vmatpush2.bf16.msra.mxu0 0
        %776 = vmatprep.subr.bf16.mxu0 0
        %777 = vmatpush2.bf16.msra.mxu0 0
        %778 = vmatprep.subr.bf16.mxu0 0
        %779 = vmatpush2.bf16.msra.mxu0 0
        %780 = vmatprep.subr.bf16.mxu0 0
        %781 = vmatpush2.bf16.msra.mxu0 0
        %782 = vmatprep.subr.bf16.mxu0 0
        %783 = vmatpush2.bf16.msra.mxu0 0
        %784 = vmatprep.subr.bf16.mxu0 0
        %785 = vmatpush2.bf16.msra.mxu0 0
        %786 = vmatprep.mubr.bf16.mxu0 0
        %787 = vmatmul.mubr.bf16.gmra.mxu0 %v676
        %v788 = vpop.f32.mrf.mxu0
        %v789 = vadd.f32 %v704, %v788
        %v790 = vpop.f32.mrf.mxu0
        %v791 = vpop.f32.mrf.mxu0
        %v792 = vadd.f32 %v704, %v791
        %v793 = vpop.f32.mrf.mxu0
        %794 = vmatprep.mubr.bf16.mxu0 0
        %795 = vmatmul.mubr.bf16.gmra.mxu0 %v677
        %v796 = vpop.f32.mrf.mxu0
        %v797 = vadd.f32 %v704, %v796
        %v798 = vpop.f32.mrf.mxu0
        %v799 = vpop.f32.mrf.mxu0
        %v800 = vadd.f32 %v704, %v799
        %v801 = vpop.f32.mrf.mxu0
        %802 = vmatprep.mubr.bf16.mxu0 0
        %803 = vmatmul.mubr.bf16.gmra.mxu0 %v678
        %v804 = vpop.f32.mrf.mxu0
        %v805 = vadd.f32 %v704, %v804
        %v806 = vpop.f32.mrf.mxu0
        %v807 = vpop.f32.mrf.mxu0
        %v808 = vadd.f32 %v704, %v807
        %v809 = vpop.f32.mrf.mxu0
        %810 = vmatprep.mubr.bf16.mxu0 0
        %811 = vmatmul.mubr.bf16.gmra.mxu0 %v679
        %v812 = vpop.f32.mrf.mxu0
        %v813 = vadd.f32 %v704, %v812
        %v814 = vpop.f32.mrf.mxu0
        %v815 = vpop.f32.mrf.mxu0
        %v816 = vadd.f32 %v704, %v815
        %v817 = vpop.f32.mrf.mxu0
        %818 = vmatprep.mubr.bf16.mxu0 0
        %819 = vmatmul.mubr.bf16.gmra.mxu0 %v680
        %v820 = vpop.f32.mrf.mxu0
        %v821 = vadd.f32 %v704, %v820
        %v822 = vpop.f32.mrf.mxu0
        %v823 = vpop.f32.mrf.mxu0
        %v824 = vadd.f32 %v704, %v823
        %v825 = vpop.f32.mrf.mxu0
        %826 = vmatprep.mubr.bf16.mxu0 0
        %827 = vmatmul.mubr.bf16.gmra.mxu0 %v681
        %v828 = vpop.f32.mrf.mxu0
        %v829 = vadd.f32 %v704, %v828
        %v830 = vpop.f32.mrf.mxu0
        %v831 = vpop.f32.mrf.mxu0
        %v832 = vadd.f32 %v704, %v831
        %v833 = vpop.f32.mrf.mxu0
        %834 = vmatprep.mubr.bf16.mxu0 0
        %835 = vmatmul.mubr.bf16.gmra.mxu0 %v682
        %v836 = vpop.f32.mrf.mxu0
        %v837 = vadd.f32 %v704, %v836
        %v838 = vpop.f32.mrf.mxu0
        %v839 = vpop.f32.mrf.mxu0
        %v840 = vpop.f32.mrf.mxu0
        %841 = vdwg.mxu0
        %v842 = vmax.f32 %v789, 0.0
        %v843 = vmax.f32 %v792, 0.0
        %v844 = vmax.f32 %v797, 0.0
        %v845 = vmax.f32 %v800, 0.0
        %v846 = vmax.f32 %v805, 0.0
        %v847 = vmax.f32 %v808, 0.0
        %v848 = vmax.f32 %v813, 0.0
        %v849 = vmax.f32 %v816, 0.0
        %v850 = vmax.f32 %v821, 0.0
        %v851 = vmax.f32 %v824, 0.0
        %v852 = vmax.f32 %v829, 0.0
        %v853 = vmax.f32 %v832, 0.0
        %v854 = vmax.f32 %v837, 0.0
        %v855 = vmin.f32 %v842, 6.0
        %v856 = vmin.f32 %v843, 6.0
        %v857 = vmin.f32 %v844, 6.0
        %v858 = vmin.f32 %v845, 6.0
        %v859 = vmin.f32 %v846, 6.0
        %v860 = vmin.f32 %v847, 6.0
        %v861 = vmin.f32 %v848, 6.0
        %v862 = vmin.f32 %v849, 6.0
        %v863 = vmin.f32 %v850, 6.0
        %v864 = vmin.f32 %v851, 6.0
        %v865 = vmin.f32 %v852, 6.0
        %v866 = vmin.f32 %v853, 6.0
        %v867 = vmin.f32 %v854, 6.0
        %869 = vset.pattern.permute.xlu0 0
        %870 = vperm.xlu0 %869, %v412
        %v871 = vpop.permute.xlu0 %870
        %874 = vset.pattern.permute.xlu0 0
        %875 = vperm.xlu0 %874, %v413
        %v876 = vpop.permute.xlu0 %875
        %879 = vset.pattern.permute.xlu0 0
        %880 = vperm.xlu0 %879, %v414
        %v881 = vpop.permute.xlu0 %880
        %884 = vset.pattern.permute.xlu0 0
        %885 = vperm.xlu0 %884, %v415
        %v886 = vpop.permute.xlu0 %885
        %889 = vset.pattern.permute.xlu0 0
        %890 = vperm.xlu0 %889, %v416
        %v891 = vpop.permute.xlu0 %890
        %894 = vset.pattern.permute.xlu0 0
        %895 = vperm.xlu0 %894, %v417
        %v896 = vpop.permute.xlu0 %895
        %899 = vset.pattern.permute.xlu0 0
        %900 = vperm.xlu0 %899, %v418
        %v901 = vpop.permute.xlu0 %900
        %904 = vset.pattern.permute.xlu0 0
        %905 = vperm.xlu0 %904, %v419
        %v906 = vpop.permute.xlu0 %905
        %909 = vset.pattern.permute.xlu0 0
        %910 = vperm.xlu0 %909, %v420
        %v911 = vpop.permute.xlu0 %910
        %914 = vset.pattern.permute.xlu0 0
        %915 = vperm.xlu0 %914, %v421
        %v916 = vpop.permute.xlu0 %915
        %919 = vset.pattern.permute.xlu0 0
        %920 = vperm.xlu0 %919, %v422
        %v921 = vpop.permute.xlu0 %920
        %924 = vset.pattern.permute.xlu0 0
        %925 = vperm.xlu0 %924, %v423
        %v926 = vpop.permute.xlu0 %925
        %929 = vset.pattern.permute.xlu0 0
        %930 = vperm.xlu0 %929, %v424
        %v931 = vpop.permute.xlu0 %930
        %v933 = vmul.f32 %v855, %v871
        %v934 = vmul.f32 %v856, %v876
        %v935 = vmul.f32 %v857, %v881
        %v936 = vmul.f32 %v858, %v886
        %v937 = vmul.f32 %v859, %v891
        %v938 = vmul.f32 %v860, %v896
        %v939 = vmul.f32 %v861, %v901
        %v940 = vmul.f32 %v862, %v906
        %v941 = vmul.f32 %v863, %v911
        %v942 = vmul.f32 %v864, %v916
        %v943 = vmul.f32 %v865, %v921
        %v944 = vmul.f32 %v866, %v926
        %v945 = vmul.f32 %v867, %v931
        %946 = vst [vmem:[#allocation3] sm:$0xff] %v933
        %947 = vst [vmem:[#allocation3 + $0x8] sm:$0xff] %v934
        %948 = vst [vmem:[#allocation3 + $0x10] sm:$0xff] %v935
        %949 = vst [vmem:[#allocation3 + $0x18] sm:$0xff] %v936
        %950 = vst [vmem:[#allocation3 + $0x20] sm:$0xff] %v937
        %951 = vst [vmem:[#allocation3 + $0x28] sm:$0xff] %v938
        %952 = vst [vmem:[#allocation3 + $0x30] sm:$0xff] %v939
        %953 = vst [vmem:[#allocation3 + $0x38] sm:$0xff] %v940
        %954 = vst [vmem:[#allocation3 + $0x40] sm:$0xff] %v941
        %955 = vst [vmem:[#allocation3 + $0x48] sm:$0xff] %v942
        %956 = vst [vmem:[#allocation3 + $0x50] sm:$0xff] %v943
        %957 = vst [vmem:[#allocation3 + $0x58] sm:$0xff] %v944
        %958 = vst [vmem:[#allocation3 + $0x60] sm:$0xf] %v945
        %v959 = vld [vmem:[#allocation3] sm:$0xff]
        %v960 = vld [vmem:[#allocation3 + $0x8] sm:$0xff]
        %v961 = vld [vmem:[#allocation3 + $0x10] sm:$0xff]
        %v962 = vld [vmem:[#allocation3 + $0x18] sm:$0xff]
        %v963 = vld [vmem:[#allocation3 + $0x20] sm:$0xff]
        %v964 = vld [vmem:[#allocation3 + $0x28] sm:$0xff]
        %v965 = vld [vmem:[#allocation3 + $0x30] sm:$0xff]
        %v966 = vld [vmem:[#allocation3 + $0x38] sm:$0xff]
        %v967 = vld [vmem:[#allocation3 + $0x40] sm:$0xff]
        %v968 = vld [vmem:[#allocation3 + $0x48] sm:$0x3f]
        %v969 = vld [vmem:[%s6] sm:$0x1]
        %v970 = vlaneseq
        %v971 = vshrl.u32 %v970, 7
        %v972 = vsub.s32 0, %v971
        %v973 = vrot.slane %v969, %v972
        %v974 = vmul.f32 %v959, %v973
        %v975 = vmul.f32 %v960, %v973
        %v976 = vmul.f32 %v961, %v973
        %v977 = vmul.f32 %v962, %v973
        %v978 = vmul.f32 %v963, %v973
        %v979 = vmul.f32 %v964, %v973
        %v980 = vmul.f32 %v965, %v973
        %v981 = vmul.f32 %v966, %v973
        %v982 = vmul.f32 %v967, %v973
        %v983 = vmul.f32 %v968, %v973
        %v984 = vadd.f32 %v974, 0.0
        %v985 = vadd.f32 %v975, 0.0
        %v986 = vadd.f32 %v976, 0.0
        %v987 = vadd.f32 %v977, 0.0
        %v988 = vadd.f32 %v978, 0.0
        %v989 = vadd.f32 %v979, 0.0
        %v990 = vadd.f32 %v980, 0.0
        %v991 = vadd.f32 %v981, 0.0
        %v992 = vadd.f32 %v982, 0.0
        %v993 = vadd.f32 %v983, 0.0
        %v994 = vld [vmem:[#allocation3 + $0x1] sm:$0xff]
        %v995 = vld [vmem:[#allocation3 + $0x9] sm:$0xff]
        %v996 = vld [vmem:[#allocation3 + $0x11] sm:$0xff]
        %v997 = vld [vmem:[#allocation3 + $0x19] sm:$0xff]
        %v998 = vld [vmem:[#allocation3 + $0x21] sm:$0xff]
        %v999 = vld [vmem:[#allocation3 + $0x29] sm:$0xff]
        %v1000 = vld [vmem:[#allocation3 + $0x31] sm:$0xff]
        %v1001 = vld [vmem:[#allocation3 + $0x39] sm:$0xff]
        %v1002 = vld [vmem:[#allocation3 + $0x41] sm:$0xff]
        %v1003 = vld [vmem:[#allocation3 + $0x49] sm:$0x3f]
        %v1004 = vld [vmem:[%s6 + $0x1] sm:$0x1]
        %v1005 = vlaneseq
        %v1006 = vshrl.u32 %v1005, 7
        %v1007 = vsub.s32 0, %v1006
        %v1008 = vrot.slane %v1004, %v1007
        %v1009 = vmul.f32 %v994, %v1008
        %v1010 = vmul.f32 %v995, %v1008
        %v1011 = vmul.f32 %v996, %v1008
        %v1012 = vmul.f32 %v997, %v1008
        %v1013 = vmul.f32 %v998, %v1008
        %v1014 = vmul.f32 %v999, %v1008
        %v1015 = vmul.f32 %v1000, %v1008
        %v1016 = vmul.f32 %v1001, %v1008
        %v1017 = vmul.f32 %v1002, %v1008
        %v1018 = vmul.f32 %v1003, %v1008
        %v1019 = vadd.f32 %v984, %v1009
        %v1020 = vadd.f32 %v985, %v1010
        %v1021 = vadd.f32 %v986, %v1011
        %v1022 = vadd.f32 %v987, %v1012
        %v1023 = vadd.f32 %v988, %v1013
        %v1024 = vadd.f32 %v989, %v1014
        %v1025 = vadd.f32 %v990, %v1015
        %v1026 = vadd.f32 %v991, %v1016
        %v1027 = vadd.f32 %v992, %v1017
        %v1028 = vadd.f32 %v993, %v1018
        %v1029 = vld [vmem:[#allocation3 + $0x2] sm:$0xff]
        %v1030 = vld [vmem:[#allocation3 + $0xa] sm:$0xff]
        %v1031 = vld [vmem:[#allocation3 + $0x12] sm:$0xff]
        %v1032 = vld [vmem:[#allocation3 + $0x1a] sm:$0xff]
        %v1033 = vld [vmem:[#allocation3 + $0x22] sm:$0xff]
        %v1034 = vld [vmem:[#allocation3 + $0x2a] sm:$0xff]
        %v1035 = vld [vmem:[#allocation3 + $0x32] sm:$0xff]
        %v1036 = vld [vmem:[#allocation3 + $0x3a] sm:$0xff]
        %v1037 = vld [vmem:[#allocation3 + $0x42] sm:$0xff]
        %v1038 = vld [vmem:[#allocation3 + $0x4a] sm:$0x3f]
        %v1039 = vld [vmem:[%s6 + $0x2] sm:$0x1]
        %v1040 = vlaneseq
        %v1041 = vshrl.u32 %v1040, 7
        %v1042 = vsub.s32 0, %v1041
        %v1043 = vrot.slane %v1039, %v1042
        %v1044 = vmul.f32 %v1029, %v1043
        %v1045 = vmul.f32 %v1030, %v1043
        %v1046 = vmul.f32 %v1031, %v1043
        %v1047 = vmul.f32 %v1032, %v1043
        %v1048 = vmul.f32 %v1033, %v1043
        %v1049 = vmul.f32 %v1034, %v1043
        %v1050 = vmul.f32 %v1035, %v1043
        %v1051 = vmul.f32 %v1036, %v1043
        %v1052 = vmul.f32 %v1037, %v1043
        %v1053 = vmul.f32 %v1038, %v1043
        %v1054 = vadd.f32 %v1019, %v1044
        %v1055 = vadd.f32 %v1020, %v1045
        %v1056 = vadd.f32 %v1021, %v1046
        %v1057 = vadd.f32 %v1022, %v1047
        %v1058 = vadd.f32 %v1023, %v1048
        %v1059 = vadd.f32 %v1024, %v1049
        %v1060 = vadd.f32 %v1025, %v1050
        %v1061 = vadd.f32 %v1026, %v1051
        %v1062 = vadd.f32 %v1027, %v1052
        %v1063 = vadd.f32 %v1028, %v1053
        %v1064 = vld [vmem:[#allocation3 + $0x4a] sm:$0xff]
        %v1065 = vld [vmem:[#allocation3 + $0x52] sm:$0x3f]
        %v1066 = vld [vmem:[%s6 + $0x3] sm:$0x1]
        %v1067 = vlaneseq
        %v1068 = vshrl.u32 %v1067, 7
        %v1069 = vsub.s32 0, %v1068
        %v1070 = vrot.slane %v1066, %v1069
        %v1071 = vmul.f32 %v1030, %v1070
        %v1072 = vmul.f32 %v1031, %v1070
        %v1073 = vmul.f32 %v1032, %v1070
        %v1074 = vmul.f32 %v1033, %v1070
        %v1075 = vmul.f32 %v1034, %v1070
        %v1076 = vmul.f32 %v1035, %v1070
        %v1077 = vmul.f32 %v1036, %v1070
        %v1078 = vmul.f32 %v1037, %v1070
        %v1079 = vmul.f32 %v1064, %v1070
        %v1080 = vmul.f32 %v1065, %v1070
        %v1081 = vadd.f32 %v1054, %v1071
        %v1082 = vadd.f32 %v1055, %v1072
        %v1083 = vadd.f32 %v1056, %v1073
        %v1084 = vadd.f32 %v1057, %v1074
        %v1085 = vadd.f32 %v1058, %v1075
        %v1086 = vadd.f32 %v1059, %v1076
        %v1087 = vadd.f32 %v1060, %v1077
        %v1088 = vadd.f32 %v1061, %v1078
        %v1089 = vadd.f32 %v1062, %v1079
        %v1090 = vadd.f32 %v1063, %v1080
        %v1091 = vld [vmem:[#allocation3 + $0xb] sm:$0xff]
        %v1092 = vld [vmem:[#allocation3 + $0x13] sm:$0xff]
        %v1093 = vld [vmem:[#allocation3 + $0x1b] sm:$0xff]
        %v1094 = vld [vmem:[#allocation3 + $0x23] sm:$0xff]
        %v1095 = vld [vmem:[#allocation3 + $0x2b] sm:$0xff]
        %v1096 = vld [vmem:[#allocation3 + $0x33] sm:$0xff]
        %v1097 = vld [vmem:[#allocation3 + $0x3b] sm:$0xff]
        %v1098 = vld [vmem:[#allocation3 + $0x43] sm:$0xff]
        %v1099 = vld [vmem:[#allocation3 + $0x4b] sm:$0xff]
        %v1100 = vld [vmem:[#allocation3 + $0x53] sm:$0x3f]
        %v1101 = vld [vmem:[%s6 + $0x4] sm:$0x1]
        %v1102 = vlaneseq
        %v1103 = vshrl.u32 %v1102, 7
        %v1104 = vsub.s32 0, %v1103
        %v1105 = vrot.slane %v1101, %v1104
        %v1106 = vmul.f32 %v1091, %v1105
        %v1107 = vmul.f32 %v1092, %v1105
        %v1108 = vmul.f32 %v1093, %v1105
        %v1109 = vmul.f32 %v1094, %v1105
        %v1110 = vmul.f32 %v1095, %v1105
        %v1111 = vmul.f32 %v1096, %v1105
        %v1112 = vmul.f32 %v1097, %v1105
        %v1113 = vmul.f32 %v1098, %v1105
        %v1114 = vmul.f32 %v1099, %v1105
        %v1115 = vmul.f32 %v1100, %v1105
        %v1116 = vadd.f32 %v1081, %v1106
        %v1117 = vadd.f32 %v1082, %v1107
        %v1118 = vadd.f32 %v1083, %v1108
        %v1119 = vadd.f32 %v1084, %v1109
        %v1120 = vadd.f32 %v1085, %v1110
        %v1121 = vadd.f32 %v1086, %v1111
        %v1122 = vadd.f32 %v1087, %v1112
        %v1123 = vadd.f32 %v1088, %v1113
        %v1124 = vadd.f32 %v1089, %v1114
        %v1125 = vadd.f32 %v1090, %v1115
        %v1126 = vld [vmem:[#allocation3 + $0xc] sm:$0xff]
        %v1127 = vld [vmem:[#allocation3 + $0x14] sm:$0xff]
        %v1128 = vld [vmem:[#allocation3 + $0x1c] sm:$0xff]
        %v1129 = vld [vmem:[#allocation3 + $0x24] sm:$0xff]
        %v1130 = vld [vmem:[#allocation3 + $0x2c] sm:$0xff]
        %v1131 = vld [vmem:[#allocation3 + $0x34] sm:$0xff]
        %v1132 = vld [vmem:[#allocation3 + $0x3c] sm:$0xff]
        %v1133 = vld [vmem:[#allocation3 + $0x44] sm:$0xff]
        %v1134 = vld [vmem:[#allocation3 + $0x4c] sm:$0xff]
        %v1135 = vld [vmem:[#allocation3 + $0x54] sm:$0x3f]
        %v1136 = vld [vmem:[%s6 + $0x5] sm:$0x1]
        %v1137 = vlaneseq
        %v1138 = vshrl.u32 %v1137, 7
        %v1139 = vsub.s32 0, %v1138
        %v1140 = vrot.slane %v1136, %v1139
        %v1141 = vmul.f32 %v1126, %v1140
        %v1142 = vmul.f32 %v1127, %v1140
        %v1143 = vmul.f32 %v1128, %v1140
        %v1144 = vmul.f32 %v1129, %v1140
        %v1145 = vmul.f32 %v1130, %v1140
        %v1146 = vmul.f32 %v1131, %v1140
        %v1147 = vmul.f32 %v1132, %v1140
        %v1148 = vmul.f32 %v1133, %v1140
        %v1149 = vmul.f32 %v1134, %v1140
        %v1150 = vmul.f32 %v1135, %v1140
        %v1151 = vadd.f32 %v1116, %v1141
        %v1152 = vadd.f32 %v1117, %v1142
        %v1153 = vadd.f32 %v1118, %v1143
        %v1154 = vadd.f32 %v1119, %v1144
        %v1155 = vadd.f32 %v1120, %v1145
        %v1156 = vadd.f32 %v1121, %v1146
        %v1157 = vadd.f32 %v1122, %v1147
        %v1158 = vadd.f32 %v1123, %v1148
        %v1159 = vadd.f32 %v1124, %v1149
        %v1160 = vadd.f32 %v1125, %v1150
        %v1161 = vld [vmem:[#allocation3 + $0x54] sm:$0xff]
        %v1162 = vld [vmem:[#allocation3 + $0x5c] sm:$0x3f]
        %v1163 = vld [vmem:[%s6 + $0x6] sm:$0x1]
        %v1164 = vlaneseq
        %v1165 = vshrl.u32 %v1164, 7
        %v1166 = vsub.s32 0, %v1165
        %v1167 = vrot.slane %v1163, %v1166
        %v1168 = vmul.f32 %v1127, %v1167
        %v1169 = vmul.f32 %v1128, %v1167
        %v1170 = vmul.f32 %v1129, %v1167
        %v1171 = vmul.f32 %v1130, %v1167
        %v1172 = vmul.f32 %v1131, %v1167
        %v1173 = vmul.f32 %v1132, %v1167
        %v1174 = vmul.f32 %v1133, %v1167
        %v1175 = vmul.f32 %v1134, %v1167
        %v1176 = vmul.f32 %v1161, %v1167
        %v1177 = vmul.f32 %v1162, %v1167
        %v1178 = vadd.f32 %v1151, %v1168
        %v1179 = vadd.f32 %v1152, %v1169
        %v1180 = vadd.f32 %v1153, %v1170
        %v1181 = vadd.f32 %v1154, %v1171
        %v1182 = vadd.f32 %v1155, %v1172
        %v1183 = vadd.f32 %v1156, %v1173
        %v1184 = vadd.f32 %v1157, %v1174
        %v1185 = vadd.f32 %v1158, %v1175
        %v1186 = vadd.f32 %v1159, %v1176
        %v1187 = vadd.f32 %v1160, %v1177
        %v1188 = vld [vmem:[#allocation3 + $0x15] sm:$0xff]
        %v1189 = vld [vmem:[#allocation3 + $0x1d] sm:$0xff]
        %v1190 = vld [vmem:[#allocation3 + $0x25] sm:$0xff]
        %v1191 = vld [vmem:[#allocation3 + $0x2d] sm:$0xff]
        %v1192 = vld [vmem:[#allocation3 + $0x35] sm:$0xff]
        %v1193 = vld [vmem:[#allocation3 + $0x3d] sm:$0xff]
        %v1194 = vld [vmem:[#allocation3 + $0x45] sm:$0xff]
        %v1195 = vld [vmem:[#allocation3 + $0x4d] sm:$0xff]
        %v1196 = vld [vmem:[#allocation3 + $0x55] sm:$0xff]
        %v1197 = vld [vmem:[#allocation3 + $0x5d] sm:$0x3f]
        %v1198 = vld [vmem:[%s6 + $0x7] sm:$0x1]
        %v1199 = vlaneseq
        %v1200 = vshrl.u32 %v1199, 7
        %v1201 = vsub.s32 0, %v1200
        %v1202 = vrot.slane %v1198, %v1201
        %v1203 = vmul.f32 %v1188, %v1202
        %v1204 = vmul.f32 %v1189, %v1202
        %v1205 = vmul.f32 %v1190, %v1202
        %v1206 = vmul.f32 %v1191, %v1202
        %v1207 = vmul.f32 %v1192, %v1202
        %v1208 = vmul.f32 %v1193, %v1202
        %v1209 = vmul.f32 %v1194, %v1202
        %v1210 = vmul.f32 %v1195, %v1202
        %v1211 = vmul.f32 %v1196, %v1202
        %v1212 = vmul.f32 %v1197, %v1202
        %v1213 = vadd.f32 %v1178, %v1203
        %v1214 = vadd.f32 %v1179, %v1204
        %v1215 = vadd.f32 %v1180, %v1205
        %v1216 = vadd.f32 %v1181, %v1206
        %v1217 = vadd.f32 %v1182, %v1207
        %v1218 = vadd.f32 %v1183, %v1208
        %v1219 = vadd.f32 %v1184, %v1209
        %v1220 = vadd.f32 %v1185, %v1210
        %v1221 = vadd.f32 %v1186, %v1211
        %v1222 = vadd.f32 %v1187, %v1212
        %v1223 = vld [vmem:[#allocation3 + $0x16] sm:$0xff]
        %v1224 = vld [vmem:[#allocation3 + $0x1e] sm:$0xff]
        %v1225 = vld [vmem:[#allocation3 + $0x26] sm:$0xff]
        %v1226 = vld [vmem:[#allocation3 + $0x2e] sm:$0xff]
        %v1227 = vld [vmem:[#allocation3 + $0x36] sm:$0xff]
        %v1228 = vld [vmem:[#allocation3 + $0x3e] sm:$0xff]
        %v1229 = vld [vmem:[#allocation3 + $0x46] sm:$0xff]
        %v1230 = vld [vmem:[#allocation3 + $0x4e] sm:$0xff]
        %v1231 = vld [vmem:[#allocation3 + $0x56] sm:$0xff]
        %v1232 = vld [vmem:[#allocation3 + $0x5e] sm:$0x3f]
        %v1233 = vld [vmem:[%s6 + $0x8] sm:$0x1]
        %v1234 = vlaneseq
        %v1235 = vshrl.u32 %v1234, 7
        %v1236 = vsub.s32 0, %v1235
        %v1237 = vrot.slane %v1233, %v1236
        %v1238 = vmul.f32 %v1223, %v1237
        %v1239 = vmul.f32 %v1224, %v1237
        %v1240 = vmul.f32 %v1225, %v1237
        %v1241 = vmul.f32 %v1226, %v1237
        %v1242 = vmul.f32 %v1227, %v1237
        %v1243 = vmul.f32 %v1228, %v1237
        %v1244 = vmul.f32 %v1229, %v1237
        %v1245 = vmul.f32 %v1230, %v1237
        %v1246 = vmul.f32 %v1231, %v1237
        %v1247 = vmul.f32 %v1232, %v1237
        %v1248 = vadd.f32 %v1213, %v1238
        %v1249 = vadd.f32 %v1214, %v1239
        %v1250 = vadd.f32 %v1215, %v1240
        %v1251 = vadd.f32 %v1216, %v1241
        %v1252 = vadd.f32 %v1217, %v1242
        %v1253 = vadd.f32 %v1218, %v1243
        %v1254 = vadd.f32 %v1219, %v1244
        %v1255 = vadd.f32 %v1220, %v1245
        %v1256 = vadd.f32 %v1221, %v1246
        %v1257 = vadd.f32 %v1222, %v1247
        %v1258 = vld [vmem:[%s7] sm:$0x1]
        %v1260 = vlaneseq
        %v1261 = vshrl.u32 %v1260, 7
        %v1262 = vsub.s32 0, %v1261
        %v1263 = vrot.slane %v1258, %v1262
        %v1265 = vadd.f32 %v1248, %v1263
        %v1266 = vadd.f32 %v1249, %v1263
        %v1267 = vadd.f32 %v1250, %v1263
        %v1268 = vadd.f32 %v1251, %v1263
        %v1269 = vadd.f32 %v1252, %v1263
        %v1270 = vadd.f32 %v1253, %v1263
        %v1271 = vadd.f32 %v1254, %v1263
        %v1272 = vadd.f32 %v1255, %v1263
        %v1273 = vadd.f32 %v1256, %v1263
        %v1274 = vadd.f32 %v1257, %v1263
        %v1275 = vmax.f32 %v1265, 0.0
        %v1276 = vmax.f32 %v1266, 0.0
        %v1277 = vmax.f32 %v1267, 0.0
        %v1278 = vmax.f32 %v1268, 0.0
        %v1279 = vmax.f32 %v1269, 0.0
        %v1280 = vmax.f32 %v1270, 0.0
        %v1281 = vmax.f32 %v1271, 0.0
        %v1282 = vmax.f32 %v1272, 0.0
        %v1283 = vmax.f32 %v1273, 0.0
        %v1284 = vmax.f32 %v1274, 0.0
        %v1285 = vmin.f32 %v1275, 6.0
        %v1286 = vmin.f32 %v1276, 6.0
        %v1287 = vmin.f32 %v1277, 6.0
        %v1288 = vmin.f32 %v1278, 6.0
        %v1289 = vmin.f32 %v1279, 6.0
        %v1290 = vmin.f32 %v1280, 6.0
        %v1291 = vmin.f32 %v1281, 6.0
        %v1292 = vmin.f32 %v1282, 6.0
        %v1293 = vmin.f32 %v1283, 6.0
        %v1294 = vmin.f32 %v1284, 6.0
        %v1295 = vpack.c.bf16 %v1286, %v1285
        %v1296 = vpack.c.bf16 %v1288, %v1287
        %v1297 = vpack.c.bf16 %v1290, %v1289
        %v1298 = vpack.c.bf16 %v1292, %v1291
        %v1299 = vpack.c.bf16 %v1294, %v1293
        %v1300 = vld [vmem:[%s8] sm:$0xf]
        %v1301 = vld [vmem:[%s8 + $0x4] sm:$0xf]
        %v1302 = vld [vmem:[%s8 + $0x8] sm:$0xf]
        %v1303 = vld [vmem:[%s8 + $0xc] sm:$0xf]
        %v1304 = vld [vmem:[%s8 + $0x10] sm:$0xf]
        %v1305 = vld [vmem:[%s8 + $0x14] sm:$0xf]
        %v1306 = vld [vmem:[%s8 + $0x18] sm:$0xf]
        %v1307 = vld [vmem:[%s8 + $0x1c] sm:$0xf]
        %v1308 = vld [vmem:[%s8 + $0x20] sm:$0xf]
        %v1309 = vld [vmem:[%s8 + $0x24] sm:$0xf]
        %v1310 = vld [vmem:[%s8 + $0x28] sm:$0xf]
        %v1311 = vld [vmem:[%s8 + $0x2c] sm:$0xf]
        %v1312 = vld [vmem:[%s8 + $0x30] sm:$0xf]
        %v1313 = vld [vmem:[%s8 + $0x34] sm:$0xf]
        %v1314 = vld [vmem:[%s8 + $0x38] sm:$0xf]
        %v1315 = vld [vmem:[%s8 + $0x3c] sm:$0xf]
        %v1316 = vld [vmem:[%s9] sm:$0x1]
        %v1318 = vlaneseq
        %v1319 = vshrl.u32 %v1318, 7
        %v1320 = vsub.s32 0, %v1319
        %v1321 = vrot.slane %v1316, %v1320
        %v1339 = vunpack.c.l.b16 %v1300
        %v1340 = vunpack.c.l.b16 %v1301
        %v1341 = vunpack.c.l.b16 %v1302
        %v1342 = vunpack.c.l.b16 %v1303
        %v1343 = vunpack.c.l.b16 %v1304
        %v1344 = vunpack.c.l.b16 %v1305
        %v1345 = vunpack.c.l.b16 %v1306
        %v1346 = vunpack.c.l.b16 %v1307
        %v1347 = vunpack.c.l.b16 %v1308
        %v1348 = vunpack.c.l.b16 %v1309
        %v1349 = vunpack.c.l.b16 %v1310
        %v1350 = vunpack.c.l.b16 %v1311
        %v1351 = vunpack.c.l.b16 %v1312
        %v1352 = vunpack.c.l.b16 %v1313
        %v1353 = vunpack.c.l.b16 %v1314
        %v1354 = vunpack.c.l.b16 %v1315
        %v1355 = vpack.c.b16 %v1340, %v1339
        %v1356 = vpack.c.b16 %v1342, %v1341
        %v1357 = vpack.c.b16 %v1344, %v1343
        %v1358 = vpack.c.b16 %v1346, %v1345
        %v1359 = vpack.c.b16 %v1348, %v1347
        %v1360 = vpack.c.b16 %v1350, %v1349
        %v1361 = vpack.c.b16 %v1352, %v1351
        %v1362 = vpack.c.b16 %v1354, %v1353
        %1371 = vmatprep.subr.bf16.mxu0 0
        %1372 = vmatpush1.bf16.msra.mxu0 %v1362
        %1373 = vmatprep.subr.bf16.mxu0 0
        %1374 = vmatpush1.bf16.msra.mxu0 %v1361
        %1375 = vmatprep.subr.bf16.mxu0 0
        %1376 = vmatpush1.bf16.msra.mxu0 %v1360
        %1377 = vmatprep.subr.bf16.mxu0 0
        %1378 = vmatpush1.bf16.msra.mxu0 %v1359
        %1379 = vmatprep.subr.bf16.mxu0 0
        %1380 = vmatpush1.bf16.msra.mxu0 %v1358
        %1381 = vmatprep.subr.bf16.mxu0 0
        %1382 = vmatpush1.bf16.msra.mxu0 %v1357
        %1383 = vmatprep.subr.bf16.mxu0 0
        %1384 = vmatpush1.bf16.msra.mxu0 %v1356
        %1385 = vmatprep.subr.bf16.mxu0 0
        %1386 = vmatpush1.bf16.msra.mxu0 %v1355
        %1387 = vmatprep.subr.bf16.mxu0 0
        %1388 = vmatpush2.bf16.msra.mxu0 0
        %1389 = vmatprep.subr.bf16.mxu0 0
        %1390 = vmatpush2.bf16.msra.mxu0 0
        %1391 = vmatprep.subr.bf16.mxu0 0
        %1392 = vmatpush2.bf16.msra.mxu0 0
        %1393 = vmatprep.subr.bf16.mxu0 0
        %1394 = vmatpush2.bf16.msra.mxu0 0
        %1395 = vmatprep.subr.bf16.mxu0 0
        %1396 = vmatpush2.bf16.msra.mxu0 0
        %1397 = vmatprep.subr.bf16.mxu0 0
        %1398 = vmatpush2.bf16.msra.mxu0 0
        %1399 = vmatprep.subr.bf16.mxu0 0
        %1400 = vmatpush2.bf16.msra.mxu0 0
        %1401 = vmatprep.subr.bf16.mxu0 0
        %1402 = vmatpush2.bf16.msra.mxu0 0
        %1403 = vmatprep.mubr.bf16.mxu0 0
        %1404 = vmatmul.mubr.bf16.gmra.mxu0 %v1295
        %v1405 = vpop.f32.mrf.mxu0
        %v1406 = vadd.f32 %v1321, %v1405
        %v1407 = vpop.f32.mrf.mxu0
        %v1408 = vpop.f32.mrf.mxu0
        %v1409 = vadd.f32 %v1321, %v1408
        %v1410 = vpop.f32.mrf.mxu0
        %1411 = vmatprep.mubr.bf16.mxu0 0
        %1412 = vmatmul.mubr.bf16.gmra.mxu0 %v1296
        %v1413 = vpop.f32.mrf.mxu0
        %v1414 = vadd.f32 %v1321, %v1413
        %v1415 = vpop.f32.mrf.mxu0
        %v1416 = vpop.f32.mrf.mxu0
        %v1417 = vadd.f32 %v1321, %v1416
        %v1418 = vpop.f32.mrf.mxu0
        %1419 = vmatprep.mubr.bf16.mxu0 0
        %1420 = vmatmul.mubr.bf16.gmra.mxu0 %v1297
        %v1421 = vpop.f32.mrf.mxu0
        %v1422 = vadd.f32 %v1321, %v1421
        %v1423 = vpop.f32.mrf.mxu0
        %v1424 = vpop.f32.mrf.mxu0
        %v1425 = vadd.f32 %v1321, %v1424
        %v1426 = vpop.f32.mrf.mxu0
        %1427 = vmatprep.mubr.bf16.mxu0 0
        %1428 = vmatmul.mubr.bf16.gmra.mxu0 %v1298
        %v1429 = vpop.f32.mrf.mxu0
        %v1430 = vadd.f32 %v1321, %v1429
        %v1431 = vpop.f32.mrf.mxu0
        %v1432 = vpop.f32.mrf.mxu0
        %v1433 = vadd.f32 %v1321, %v1432
        %v1434 = vpop.f32.mrf.mxu0
        %1435 = vmatprep.mubr.bf16.mxu0 0
        %1436 = vmatmul.mubr.bf16.gmra.mxu0 %v1299
        %v1437 = vpop.f32.mrf.mxu0
        %v1438 = vadd.f32 %v1321, %v1437
        %v1439 = vpop.f32.mrf.mxu0
        %v1440 = vpop.f32.mrf.mxu0
        %v1441 = vadd.f32 %v1321, %v1440
        %v1442 = vpop.f32.mrf.mxu0
        %1443 = vdwg.mxu0
        %v1444 = vld [vmem:[#allocation2 + $0xb] sm:$0xff]
        %v1445 = vld [vmem:[#allocation2 + $0x13] sm:$0xff]
        %v1446 = vld [vmem:[#allocation2 + $0x1b] sm:$0xff]
        %v1447 = vld [vmem:[#allocation2 + $0x23] sm:$0xff]
        %v1448 = vld [vmem:[#allocation2 + $0x2b] sm:$0xff]
        %v1449 = vld [vmem:[#allocation2 + $0x33] sm:$0xff]
        %v1450 = vld [vmem:[#allocation2 + $0x3b] sm:$0xff]
        %v1451 = vld [vmem:[#allocation2 + $0x43] sm:$0xff]
        %v1452 = vld [vmem:[#allocation2 + $0x4b] sm:$0xff]
        %v1453 = vld [vmem:[#allocation2 + $0x53] sm:$0x3f]
        %v1454 = vadd.f32 %v1406, %v1444
        %v1455 = vadd.f32 %v1409, %v1445
        %v1456 = vadd.f32 %v1414, %v1446
        %v1457 = vadd.f32 %v1417, %v1447
        %v1458 = vadd.f32 %v1422, %v1448
        %v1459 = vadd.f32 %v1425, %v1449
        %v1460 = vadd.f32 %v1430, %v1450
        %v1461 = vadd.f32 %v1433, %v1451
        %v1462 = vadd.f32 %v1438, %v1452
        %v1463 = vadd.f32 %v1441, %v1453
        %v1464 = vld [vmem:[%s1 + $0xb] sm:$0xff]
        %v1465 = vld [vmem:[%s1 + $0x13] sm:$0xff]
        %v1466 = vld [vmem:[%s1 + $0x1b] sm:$0xff]
        %v1467 = vld [vmem:[%s1 + $0x23] sm:$0xff]
        %v1468 = vld [vmem:[%s1 + $0x2b] sm:$0xff]
        %v1469 = vld [vmem:[%s1 + $0x33] sm:$0xff]
        %v1470 = vld [vmem:[%s1 + $0x3b] sm:$0xff]
        %v1471 = vld [vmem:[%s1 + $0x43] sm:$0xff]
        %v1472 = vld [vmem:[%s1 + $0x4b] sm:$0xff]
        %v1473 = vld [vmem:[%s1 + $0x53] sm:$0x3f]
        %1475 = vset.pattern.permute.xlu0 0
        %1476 = vperm.xlu0 %1475, %v1464
        %v1477 = vpop.permute.xlu0 %1476
        %1480 = vset.pattern.permute.xlu0 0
        %1481 = vperm.xlu0 %1480, %v1465
        %v1482 = vpop.permute.xlu0 %1481
        %1485 = vset.pattern.permute.xlu0 0
        %1486 = vperm.xlu0 %1485, %v1466
        %v1487 = vpop.permute.xlu0 %1486
        %1490 = vset.pattern.permute.xlu0 0
        %1491 = vperm.xlu0 %1490, %v1467
        %v1492 = vpop.permute.xlu0 %1491
        %1495 = vset.pattern.permute.xlu0 0
        %1496 = vperm.xlu0 %1495, %v1468
        %v1497 = vpop.permute.xlu0 %1496
        %1500 = vset.pattern.permute.xlu0 0
        %1501 = vperm.xlu0 %1500, %v1469
        %v1502 = vpop.permute.xlu0 %1501
        %1505 = vset.pattern.permute.xlu0 0
        %1506 = vperm.xlu0 %1505, %v1470
        %v1507 = vpop.permute.xlu0 %1506
        %1510 = vset.pattern.permute.xlu0 0
        %1511 = vperm.xlu0 %1510, %v1471
        %v1512 = vpop.permute.xlu0 %1511
        %1515 = vset.pattern.permute.xlu0 0
        %1516 = vperm.xlu0 %1515, %v1472
        %v1517 = vpop.permute.xlu0 %1516
        %1520 = vset.pattern.permute.xlu0 0
        %1521 = vperm.xlu0 %1520, %v1473
        %v1522 = vpop.permute.xlu0 %1521
        %v1524 = vmul.f32 %v1454, %v1477
        %v1525 = vmul.f32 %v1455, %v1482
        %v1526 = vmul.f32 %v1456, %v1487
        %v1527 = vmul.f32 %v1457, %v1492
        %v1528 = vmul.f32 %v1458, %v1497
        %v1529 = vmul.f32 %v1459, %v1502
        %v1530 = vmul.f32 %v1460, %v1507
        %v1531 = vmul.f32 %v1461, %v1512
        %v1532 = vmul.f32 %v1462, %v1517
        %v1533 = vmul.f32 %v1463, %v1522
        %v1534 = vadd.f32 %v1524, %v1525
        %v1535 = vadd.f32 %v1534, %v1526
        %v1536 = vadd.f32 %v1535, %v1527
        %v1537 = vadd.f32 %v1536, %v1528
        %v1538 = vadd.f32 %v1537, %v1529
        %v1539 = vadd.f32 %v1538, %v1530
        %v1540 = vadd.f32 %v1539, %v1531
        %v1541 = vadd.f32 %v1540, %v1532
        %vm1542 = vcmask 1045504
        %v1543 = vsel %vm1542, %v1533, 0.0
        %v1544 = vadd.f32 %v1541, %v1543
        %v1545 = vrot.slane %v1544, 4
        %v1546 = vadd.f32 %v1544, %v1545
        %v1547 = vrot.slane %v1546, 2
        %v1548 = vadd.f32 %v1546, %v1547
        %v1549 = vrot.slane %v1548, 1
        %v1550 = vadd.f32 %v1548, %v1549
        %v1551 = vmul.f32 %v1550, 0.015625
        %v1552 = vpack.c.bf16 %v1551, %v1551
        %v1553 = vld [vmem:[%s10] sm:$0xf]
        %v1554 = vld [vmem:[%s10 + $0x4] sm:$0xf]
        %v1555 = vld [vmem:[%s10 + $0x8] sm:$0xf]
        %v1556 = vld [vmem:[%s10 + $0xc] sm:$0xf]
        %v1557 = vld [vmem:[%s10 + $0x10] sm:$0xf]
        %v1558 = vld [vmem:[%s10 + $0x14] sm:$0xf]
        %v1559 = vld [vmem:[%s10 + $0x18] sm:$0xf]
        %v1560 = vld [vmem:[%s10 + $0x1c] sm:$0xf]
        %v1561 = vld [vmem:[%s10 + $0x20] sm:$0xf]
        %v1562 = vld [vmem:[%s10 + $0x24] sm:$0xf]
        %v1563 = vld [vmem:[%s10 + $0x28] sm:$0xf]
        %v1564 = vld [vmem:[%s10 + $0x2c] sm:$0xf]
        %v1565 = vld [vmem:[%s10 + $0x30] sm:$0xf]
        %v1566 = vld [vmem:[%s10 + $0x34] sm:$0xf]
        %v1567 = vld [vmem:[%s10 + $0x38] sm:$0xf]
        %v1568 = vld [vmem:[%s10 + $0x3c] sm:$0xf]
        %v1569 = vld [vmem:[%s11] sm:$0x1]
        %v1586 = vunpack.c.l.b16 %v1553
        %v1587 = vunpack.c.l.b16 %v1554
        %v1588 = vunpack.c.l.b16 %v1555
        %v1589 = vunpack.c.l.b16 %v1556
        %v1590 = vunpack.c.l.b16 %v1557
        %v1591 = vunpack.c.l.b16 %v1558
        %v1592 = vunpack.c.l.b16 %v1559
        %v1593 = vunpack.c.l.b16 %v1560
        %v1594 = vunpack.c.l.b16 %v1561
        %v1595 = vunpack.c.l.b16 %v1562
        %v1596 = vunpack.c.l.b16 %v1563
        %v1597 = vunpack.c.l.b16 %v1564
        %v1598 = vunpack.c.l.b16 %v1565
        %v1599 = vunpack.c.l.b16 %v1566
        %v1600 = vunpack.c.l.b16 %v1567
        %v1601 = vunpack.c.l.b16 %v1568
        %v1602 = vpack.c.b16 %v1587, %v1586
        %v1603 = vpack.c.b16 %v1589, %v1588
        %v1604 = vpack.c.b16 %v1591, %v1590
        %v1605 = vpack.c.b16 %v1593, %v1592
        %v1606 = vpack.c.b16 %v1595, %v1594
        %v1607 = vpack.c.b16 %v1597, %v1596
        %v1608 = vpack.c.b16 %v1599, %v1598
        %v1609 = vpack.c.b16 %v1601, %v1600
        %1618 = vmatprep.subr.bf16.mxu0 0
        %1619 = vmatpush1.bf16.msra.mxu0 %v1609
        %1620 = vmatprep.subr.bf16.mxu0 0
        %1621 = vmatpush1.bf16.msra.mxu0 %v1608
        %1622 = vmatprep.subr.bf16.mxu0 0
        %1623 = vmatpush1.bf16.msra.mxu0 %v1607
        %1624 = vmatprep.subr.bf16.mxu0 0
        %1625 = vmatpush1.bf16.msra.mxu0 %v1606
        %1626 = vmatprep.subr.bf16.mxu0 0
        %1627 = vmatpush1.bf16.msra.mxu0 %v1605
        %1628 = vmatprep.subr.bf16.mxu0 0
        %1629 = vmatpush1.bf16.msra.mxu0 %v1604
        %1630 = vmatprep.subr.bf16.mxu0 0
        %1631 = vmatpush1.bf16.msra.mxu0 %v1603
        %1632 = vmatprep.subr.bf16.mxu0 0
        %1633 = vmatpush1.bf16.msra.mxu0 %v1602
        %1634 = vmatprep.subr.bf16.mxu0 0
        %1635 = vmatpush2.bf16.msra.mxu0 0
        %1636 = vmatprep.subr.bf16.mxu0 0
        %1637 = vmatpush2.bf16.msra.mxu0 0
        %1638 = vmatprep.subr.bf16.mxu0 0
        %1639 = vmatpush2.bf16.msra.mxu0 0
        %1640 = vmatprep.subr.bf16.mxu0 0
        %1641 = vmatpush2.bf16.msra.mxu0 0
        %1642 = vmatprep.subr.bf16.mxu0 0
        %1643 = vmatpush2.bf16.msra.mxu0 0
        %1644 = vmatprep.subr.bf16.mxu0 0
        %1645 = vmatpush2.bf16.msra.mxu0 0
        %1646 = vmatprep.subr.bf16.mxu0 0
        %1647 = vmatpush2.bf16.msra.mxu0 0
        %1648 = vmatprep.subr.bf16.mxu0 0
        %1649 = vmatpush2.bf16.msra.mxu0 0
        %1650 = vmatprep.mubr.bf16.mxu0 0
        %1651 = vmatmul.mubr.bf16.gmra.mxu0 %v1552
        %v1652 = vpop.f32.mrf.mxu0
        %v1653 = vadd.f32 %v1569, %v1652
        %v1654 = vpop.f32.mrf.mxu0
        %v1655 = vpop.f32.mrf.mxu0
        %v1656 = vpop.f32.mrf.mxu0
        %1657 = vdwg.mxu0
        %1658 = vst [vmem:[%s405] sm:$0x1] %v1653
        %s1659 = sand.u32 %s291, 1
        %s1660 = scalar_lea.sflag [#allocation5], %s1659
        %s1661 = sand.u32 %s291, 1
        %s1662 = scalar_lea.vmem [#allocation4], %s1661
        // Predicated region
        $region69: #{mobilenetv2_mixwrap_forward.1} parent=67 // pred_check
          %p1663 = pneg %p301
        $region70: #{mobilenetv2_mixwrap_forward.1} parent=67 // pred_check_branch
          %1665 = sbr.rel (%p1663) target = $region72
        $region71: #{mobilenetv2_mixwrap_forward.1} parent=67 // pred_region
          %s1667 = ssub.s32 16, 16
          %1668 = vsyncadd %s1660, %s1667
          %s1669 = smul.addr %s26, 16
          %s1670 = scalar_lea.hbm %s12, %s1669
          %s1672 = sshll.u32 %s1662, 4
          %s1673 = int_to_ptr.vmem [resolvable:$true] %s1672
          %1675 = dma.vmem_to_hbm [thread:$0]  %s1673, 16, %s1670, %s1660
        $region72: #{mobilenetv2_mixwrap_forward.1} parent=67 // pred_fallthru
          _
      $region68: #{mobilenetv2_mixwrap_forward.1} parent=5 // pred_fallthru
        _
      %p1676 = scmp.le.s32.totalorder 2, %s21
      // Predicated region
      $region73: #{mobilenetv2_mixwrap_forward.1} parent=5 // pred_check
        %p1677 = pneg %p1676
      $region74: #{mobilenetv2_mixwrap_forward.1} parent=5 // pred_check_branch
        %1679 = sbr.rel (%p1677) target = $region76
      $region75: #{mobilenetv2_mixwrap_forward.1} parent=5 // pred_region
        %s1680 = ssub.s32 %s21, 2
        // Predicated region
        $region77: #{mobilenetv2_mixwrap_forward.1} parent=75 // pred_check
          %p1681 = pneg %p307
        $region78: #{mobilenetv2_mixwrap_forward.1} parent=75 // pred_check_branch
          %1683 = sbr.rel (%p1681) target = $region80
        $region79: #{mobilenetv2_mixwrap_forward.1} parent=75 // pred_region
          %s1684 = sand.u32 %s292, 1
          %s1685 = scalar_lea.sflag [#allocation5], %s1684
          %s1686 = sand.u32 %s292, 1
          %s1687 = scalar_lea.vmem [#allocation4], %s1686
          %1688 = dma.done %s1685, 16
        $region80: #{mobilenetv2_mixwrap_forward.1} parent=75 // pred_fallthru
          _
      $region76: #{mobilenetv2_mixwrap_forward.1} parent=5 // pred_fallthru
        _
    $region6: #{mobilenetv2_mixwrap_forward.1} parent=1 // loop_footer
      %s25 = sadd.s32 1, %s21
    $region7: #{mobilenetv2_mixwrap_forward.1} parent=1 // loop_footer_branch
      %20 = sbr.rel target = $region3
    $region8: #{mobilenetv2_mixwrap_forward.1} parent=1 // loop_exit
      _
    %1689 = vsyncpa [#allocation5], 1
    %s1690 = scalar_lea.sflag [#allocation5], 1
    %1691 = vsyncpa %s1690, 1

</llo_original>
